<compile_context>
chip_gen: v7x
topology: tpu7x:2x2x1
jax: 0.10.0
libtpu: 0.0.40
codegen_flags: <defaults>
</compile_context>

<pallas_src>
import math
import jax
import jax.numpy as jnp
from jax.experimental import pallas as pl
from jax.experimental.pallas import tpu as pltpu  # noqa: F401  (TPU backend)

# ---- model hyper-params (small, consistent with the module's __init__) -------------
D_MODEL    = 32
D_FF       = 64
NUM_HEADS  = 4
D_K        = 8            # d_model = num_heads * d_k
NUM_LAYERS = 2
SEQ        = 8
BATCH      = 2
EPS        = 1e-6         # TODO(synk): PyTorch nn.LayerNorm default eps is 1e-5; 1e-6 assumed for custom LayerNormalization.
NEG_INF    = 1e9


def _layer_norm(x, g, b):
    # x: (N, D) f32 ; g, b: (1, D).  rsqrt -> EUP slot (no VPU divide).
    mu = jnp.mean(x, axis=-1, keepdims=True)
    var = jnp.mean((x - mu) ** 2, axis=-1, keepdims=True)
    return (x - mu) * jax.lax.rsqrt(var + EPS) * g + b


# ------------------------------ fused encoder kernel --------------------------------
def fused_encoder_kernel(x_ref, bias_ref, w_ref, b_ref, o_ref):
    # x_ref : (N, D) f32            (N = B*S folded rows)
    # bias  : (N, N) f32            additive mask (0 / -1e9), incl. cross-batch blocks
    # w_ref : (L*64, 128) bf16      per layer: rows[0:32]  = [W_qkv(96) | W_o(32)]
    #                               rows[32:64] = [W_1(64)  | W_2^T(64)]
    # b_ref : (3L+1, 128) f32       per layer: row0 = [ln1_g|ln1_b|ln2_g|ln2_b]
    #                               row1 = [b_q|b_k|b_v|b_o], row2 = [b_1|b_2|pad]
    #                               final row = [fin_g|fin_b|pad]
    D, F, H, dk = D_MODEL, D_FF, NUM_HEADS, D_K
    x = x_ref[...].astype(jnp.float32)            # (N, D)
    bias = bias_ref[...]                          # (N, N)
    scale = 1.0 / math.sqrt(dk)

    for l in range(NUM_LAYERS):                   # static unroll: whole stack in one kernel
        wrow = 64 * l
        brow = 3 * l
        ln1_g = b_ref[brow:brow + 1, 0:D]
        ln1_b = b_ref[brow:brow + 1, D:2 * D]
        ln2_g = b_ref[brow:brow + 1, 2 * D:3 * D]
        ln2_b = b_ref[brow:brow + 1, 3 * D:4 * D]
        b_qkv = b_ref[brow + 1:brow + 2, 0:3 * D]          # (1, 96)
        b_o   = b_ref[brow + 1:brow + 2, 3 * D:4 * D]      # (1, 32)
        b_1   = b_ref[brow + 2:brow + 3, 0:F]              # (1, 64)
        b_2   = b_ref[brow + 2:brow + 3, F:F + D]          # (1, 32)

        w_qkv = w_ref[wrow:wrow + D, 0:3 * D]               # (32, 96) bf16
        w_o   = w_ref[wrow:wrow + D, 3 * D:4 * D]           # (32, 32) bf16
        w_1   = w_ref[wrow + D:wrow + 2 * D, 0:F]           # (32, 64) bf16
        w_2t  = w_ref[wrow + D:wrow + 2 * D, F:2 * F]       # (32, 64) bf16 = W_2^T

        # ---- sublayer 1: pre-LN multi-head self-attention + residual ----
        x1 = _layer_norm(x, ln1_g, ln1_b)
        qkv = jnp.dot(x1.astype(jnp.bfloat16), w_qkv,
                      preferred_element_type=jnp.float32) + b_qkv      # (N, 96)
        ctx_heads = []
        for h in range(H):                       # heads = static 8-lane slices of qkv
            qh = qkv[:, h * dk:(h + 1) * dk]
            kh = qkv[:, D + h * dk:D + (h + 1) * dk]
            vh = qkv[:, 2 * D + h * dk:2 * D + (h + 1) * dk]
            # q @ k^T as a contraction (transpose absorbed by the MXU) + hoisted bias.
            s = jax.lax.dot_general(qh, kh, (((1,), (1,)), ((), ())),
                                    preferred_element_type=jnp.float32) * scale + bias
            m = jnp.max(s, axis=-1, keepdims=True)
            e = jnp.exp(s - m)
            p = e * pl.reciprocal(jnp.sum(e, axis=-1, keepdims=True), approx=True)
            # TODO(synk): attention-prob dropout skipped (eval mode -> identity).
            ctx_heads.append(jnp.dot(p, vh, preferred_element_type=jnp.float32))
        ctx = jnp.concatenate(ctx_heads, axis=-1)                       # (N, 32)
        attn = jnp.dot(ctx.astype(jnp.bfloat16), w_o,
                       preferred_element_type=jnp.float32) + b_o
        x = x + attn                            # residual (dropout -> identity)

        # ---- sublayer 2: pre-LN position-wise feed-forward (ReLU) + residual ----
        x2 = _layer_norm(x, ln2_g, ln2_b)
        h1 = jnp.maximum(
            jnp.dot(x2.astype(jnp.bfloat16), w_1,
                    preferred_element_type=jnp.float32) + b_1, 0.0)     # (N, 64)
        ffn = jax.lax.dot_general(h1.astype(jnp.bfloat16), w_2t,
                                  (((1,), (1,)), ((), ())),
                                  preferred_element_type=jnp.float32) + b_2
        x = x + ffn

    # ---- final layer norm ----
    fr = 3 * NUM_LAYERS
    fg = b_ref[fr:fr + 1, 0:D]
    fb = b_ref[fr:fr + 1, D:2 * D]
    o_ref[...] = _layer_norm(x, fg, fb).astype(o_ref.dtype)


# ------------------------------ wrapper ----------------------------------------------
def _pack_params(layer_params, final_ln):
    """Pack all weights into one bf16 128-lane slab and all biases/LN params into one
    f32 128-lane slab (weights stored (in, out) for x @ W; transpose real PyTorch
    nn.Linear weights, which are (out, in), before loading a checkpoint)."""
    D = D_MODEL
    w_rows, b_rows = [], []
    for l in range(NUM_LAYERS):
        p = layer_params[l]
        # weight block (64, 128): [W_qkv | W_o] on top, [W_1 | W_2^T] on bottom.
        w_rows.append(jnp.concatenate([p["wq"], p["wk"], p["wv"], p["wo"]], axis=1))
        w_rows.append(jnp.concatenate([p["w1"], p["w2"].T], axis=1))
        b_rows.append(jnp.concatenate([p["ln1_g"], p["ln1_b"],
                                       p["ln2_g"], p["ln2_b"]], axis=1))
        b_rows.append(jnp.concatenate([p["bq"], p["bk"], p["bv"], p["bo"]], axis=1))
        b_rows.append(jnp.concatenate([p["b1"], p["b2"],
                                       jnp.zeros((1, D), jnp.float32)], axis=1))
    b_rows.append(jnp.concatenate([final_ln["g"], final_ln["b"],
                                   jnp.zeros((1, 2 * D), jnp.float32)], axis=1))
    w_slab = jnp.concatenate(w_rows, axis=0).astype(jnp.bfloat16)   # (L*64, 128)
    b_slab = jnp.concatenate(b_rows, axis=0)                        # (3L+1, 128) f32
    return w_slab, b_slab


def _build_attn_bias(e_mask, B, S):
    """Additive attention bias over folded rows: 0 where (same batch AND key valid), else -1e9."""
    key_valid = (e_mask[:, 0, :] != 0).reshape(-1)                   # (N,)
    batch_id = jnp.repeat(jnp.arange(B, dtype=jnp.int32), S)         # (N,)
    same = batch_id[:, None] == batch_id[None, :]                    # (N, N)
    valid = same & key_valid[None, :]
    return jnp.where(valid, 0.0, -NEG_INF).astype(jnp.float32)


def encoder_forward(x, e_mask, layer_params, final_ln):
    B, S, D = x.shape
    N = B * S
    w_slab, b_slab = _pack_params(layer_params, final_ln)
    inputs = [x.reshape(N, D), _build_attn_bias(e_mask, B, S), w_slab, b_slab]
    # Single invocation (no grid): 4 input DMAs; all activations + weights resident in VMEM.
    out = pl.pallas_call(
        fused_encoder_kernel,
        out_shape=jax.ShapeDtypeStruct((N, D), x.dtype),
    )(*inputs)
    return out.reshape(B, S, D)


# ------------------------------ deterministic parameter init -------------------------
def init_params(key):
    def dense(k, fan_in, fan_out):
        return 0.02 * jax.random.normal(k, (fan_in, fan_out), jnp.float32)

    layer_params = []
    for _ in range(NUM_LAYERS):
        key, kq, kk, kv, ko, k1, k2 = jax.random.split(key, 7)
        layer_params.append({
            "ln1_g": jnp.ones((1, D_MODEL), jnp.float32),
            "ln1_b": jnp.zeros((1, D_MODEL), jnp.float32),
            "wq": dense(kq, D_MODEL, D_MODEL), "bq": jnp.zeros((1, D_MODEL), jnp.float32),
            "wk": dense(kk, D_MODEL, D_MODEL), "bk": jnp.zeros((1, D_MODEL), jnp.float32),
            "wv": dense(kv, D_MODEL, D_MODEL), "bv": jnp.zeros((1, D_MODEL), jnp.float32),
            "wo": dense(ko, D_MODEL, D_MODEL), "bo": jnp.zeros((1, D_MODEL), jnp.float32),
            "ln2_g": jnp.ones((1, D_MODEL), jnp.float32),
            "ln2_b": jnp.zeros((1, D_MODEL), jnp.float32),
            "w1": dense(k1, D_MODEL, D_FF), "b1": jnp.zeros((1, D_FF), jnp.float32),
            "w2": dense(k2, D_FF, D_MODEL), "b2": jnp.zeros((1, D_MODEL), jnp.float32),
        })
    final_ln = {"g": jnp.ones((1, D_MODEL), jnp.float32),
                "b": jnp.zeros((1, D_MODEL), jnp.float32)}
    return layer_params, final_ln, key


# ------------------------------ main --------------------------------------------------
if __name__ == "__main__":
    key = jax.random.PRNGKey(0)
    layer_params, final_ln, key = init_params(key)

    key, kx = jax.random.split(key)
    x = jax.random.normal(kx, (BATCH, SEQ, D_MODEL), jnp.float32)

    # padding mask: batch 0 attends to all 8 positions, batch 1 only to the first 5.
    lengths = jnp.array([SEQ, 5], dtype=jnp.int32)
    pos = jnp.arange(SEQ, dtype=jnp.int32)[None, None, :]          # (1,1,S)
    e_mask = (pos < lengths[:, None, None]).astype(jnp.int32)      # (B,1,S)

    fwd = jax.jit(lambda xx, mm: encoder_forward(xx, mm, layer_params, final_ln))
    out = fwd(x, e_mask)
    out = jax.block_until_ready(out)
    assert out.shape == (BATCH, SEQ, D_MODEL)
    print("KERNEL_OK")
</pallas_src>

<mosaic_0001>
module attributes {stable_mosaic.version = 11 : i64} {
  func.func @fused_encoder_kernel(%arg0: memref<16x32xf32, #tpu.memory_space<vmem>>, %arg1: memref<16x16xf32, #tpu.memory_space<vmem>>, %arg2: memref<128x128xbf16, #tpu.memory_space<vmem>>, %arg3: memref<7x128xf32, #tpu.memory_space<vmem>>, %arg4: memref<16x32xf32, #tpu.memory_space<vmem>>) attributes {dimension_semantics = [], scalar_prefetch = 0 : i64, scratch_operands = 0 : i64, tpu.core_type = #tpu.core_type<tc>} {
    %c0 = arith.constant 0 : index
    %c0_0 = arith.constant 0 : index
    %0 = vector.load %arg0[%c0, %c0_0] : memref<16x32xf32, #tpu.memory_space<vmem>>, vector<16x32xf32>
    %c0_1 = arith.constant 0 : index
    %c0_2 = arith.constant 0 : index
    %1 = vector.load %arg1[%c0_1, %c0_2] : memref<16x16xf32, #tpu.memory_space<vmem>>, vector<16x16xf32>
    %c0_3 = arith.constant 0 : index
    %c0_4 = arith.constant 0 : index
    %2 = vector.load %arg3[%c0_3, %c0_4] : memref<7x128xf32, #tpu.memory_space<vmem>>, vector<1x32xf32>
    %c0_5 = arith.constant 0 : index
    %c32 = arith.constant 32 : index
    %3 = vector.load %arg3[%c0_5, %c32] : memref<7x128xf32, #tpu.memory_space<vmem>>, vector<1x32xf32>
    %c0_6 = arith.constant 0 : index
    %c64 = arith.constant 64 : index
    %4 = vector.load %arg3[%c0_6, %c64] : memref<7x128xf32, #tpu.memory_space<vmem>>, vector<1x32xf32>
    %c0_7 = arith.constant 0 : index
    %c96 = arith.constant 96 : index
    %5 = vector.load %arg3[%c0_7, %c96] : memref<7x128xf32, #tpu.memory_space<vmem>>, vector<1x32xf32>
    %c1 = arith.constant 1 : index
    %c0_8 = arith.constant 0 : index
    %6 = vector.load %arg3[%c1, %c0_8] : memref<7x128xf32, #tpu.memory_space<vmem>>, vector<1x96xf32>
    %c1_9 = arith.constant 1 : index
    %c96_10 = arith.constant 96 : index
    %7 = vector.load %arg3[%c1_9, %c96_10] : memref<7x128xf32, #tpu.memory_space<vmem>>, vector<1x32xf32>
    %c2 = arith.constant 2 : index
    %c0_11 = arith.constant 0 : index
    %8 = vector.load %arg3[%c2, %c0_11] : memref<7x128xf32, #tpu.memory_space<vmem>>, vector<1x64xf32>
    %c2_12 = arith.constant 2 : index
    %c64_13 = arith.constant 64 : index
    %9 = vector.load %arg3[%c2_12, %c64_13] : memref<7x128xf32, #tpu.memory_space<vmem>>, vector<1x32xf32>
    %c0_14 = arith.constant 0 : index
    %c0_15 = arith.constant 0 : index
    %10 = vector.load %arg2[%c0_14, %c0_15] : memref<128x128xbf16, #tpu.memory_space<vmem>>, vector<32x96xbf16>
    %c0_16 = arith.constant 0 : index
    %c96_17 = arith.constant 96 : index
    %11 = vector.load %arg2[%c0_16, %c96_17] : memref<128x128xbf16, #tpu.memory_space<vmem>>, vector<32x32xbf16>
    %c32_18 = arith.constant 32 : index
    %c0_19 = arith.constant 0 : index
    %12 = vector.load %arg2[%c32_18, %c0_19] : memref<128x128xbf16, #tpu.memory_space<vmem>>, vector<32x64xbf16>
    %c32_20 = arith.constant 32 : index
    %c64_21 = arith.constant 64 : index
    %13 = vector.load %arg2[%c32_20, %c64_21] : memref<128x128xbf16, #tpu.memory_space<vmem>>, vector<32x64xbf16>
    %cst = arith.constant dense<0.000000e+00> : vector<16xf32>
    %14 = vector.multi_reduction <add>, %0, %cst [1] : vector<16x32xf32> to vector<16xf32>
    %15 = vector.shape_cast %14 : vector<16xf32> to vector<16x1xf32>
    %cst_22 = arith.constant 3.200000e+01 : f32
    %16 = vector.broadcast %cst_22 : f32 to vector<16x1xf32>
    %17 = arith.divf %15, %16 : vector<16x1xf32>
    %18 = vector.broadcast %17 : vector<16x1xf32> to vector<16x32xf32>
    %19 = arith.subf %0, %18 : vector<16x32xf32>
    %20 = arith.mulf %19, %19 : vector<16x32xf32>
    %cst_23 = arith.constant dense<0.000000e+00> : vector<16xf32>
    %21 = vector.multi_reduction <add>, %20, %cst_23 [1] : vector<16x32xf32> to vector<16xf32>
    %22 = vector.shape_cast %21 : vector<16xf32> to vector<16x1xf32>
    %cst_24 = arith.constant 3.200000e+01 : f32
    %23 = vector.broadcast %cst_24 : f32 to vector<16x1xf32>
    %24 = arith.divf %22, %23 : vector<16x1xf32>
    %25 = vector.broadcast %17 : vector<16x1xf32> to vector<16x32xf32>
    %26 = arith.subf %0, %25 : vector<16x32xf32>
    %cst_25 = arith.constant 9.99999997E-7 : f32
    %27 = vector.broadcast %cst_25 : f32 to vector<16x1xf32>
    %28 = arith.addf %24, %27 : vector<16x1xf32>
    %29 = math.rsqrt %28 : vector<16x1xf32>
    %30 = vector.broadcast %29 : vector<16x1xf32> to vector<16x32xf32>
    %31 = arith.mulf %26, %30 : vector<16x32xf32>
    %32 = vector.broadcast %2 : vector<1x32xf32> to vector<16x32xf32>
    %33 = arith.mulf %31, %32 : vector<16x32xf32>
    %34 = vector.broadcast %3 : vector<1x32xf32> to vector<16x32xf32>
    %35 = arith.addf %33, %34 : vector<16x32xf32>
    %36 = arith.truncf %35 : vector<16x32xf32> to vector<16x32xbf16>
    %cst_26 = arith.constant dense<0.000000e+00> : vector<16x96xf32>
    %37 = tpu.matmul %36, %10, %cst_26 {dimension_numbers = #tpu.dot_dimension_numbers<[1], [0], [0], [1], [0, 0, 1, 1], [], []>} : vector<16x32xbf16>, vector<32x96xbf16>, vector<16x96xf32> -> vector<16x96xf32>
    %38 = vector.broadcast %6 : vector<1x96xf32> to vector<16x96xf32>
    %39 = arith.addf %37, %38 : vector<16x96xf32>
    %40 = vector.extract_strided_slice %39 {offsets = [0, 0], sizes = [16, 8], strides = [1, 1]} : vector<16x96xf32> to vector<16x8xf32>
    %41 = vector.extract_strided_slice %39 {offsets = [0, 32], sizes = [16, 8], strides = [1, 1]} : vector<16x96xf32> to vector<16x8xf32>
    %42 = vector.extract_strided_slice %39 {offsets = [0, 64], sizes = [16, 8], strides = [1, 1]} : vector<16x96xf32> to vector<16x8xf32>
    %cst_27 = arith.constant dense<0.000000e+00> : vector<16x16xf32>
    %43 = tpu.matmul %40, %41, %cst_27 {dimension_numbers = #tpu.dot_dimension_numbers<[1], [1], [0], [0], [0, 0, 1, 0], [], []>} : vector<16x8xf32>, vector<16x8xf32>, vector<16x16xf32> -> vector<16x16xf32>
    %cst_28 = arith.constant 0.353553385 : f32
    %44 = vector.broadcast %cst_28 : f32 to vector<16x16xf32>
    %45 = arith.mulf %43, %44 : vector<16x16xf32>
    %46 = arith.addf %45, %1 : vector<16x16xf32>
    %cst_29 = arith.constant dense<0xFF800000> : vector<16xf32>
    %47 = vector.multi_reduction <maximumf>, %46, %cst_29 [1] : vector<16x16xf32> to vector<16xf32>
    %48 = vector.shape_cast %47 : vector<16xf32> to vector<16x1xf32>
    %49 = vector.broadcast %48 : vector<16x1xf32> to vector<16x16xf32>
    %50 = arith.subf %46, %49 : vector<16x16xf32>
    %51 = math.exp %50 : vector<16x16xf32>
    %cst_30 = arith.constant dense<0.000000e+00> : vector<16xf32>
    %52 = vector.multi_reduction <add>, %51, %cst_30 [1] : vector<16x16xf32> to vector<16xf32>
    %53 = vector.shape_cast %52 : vector<16xf32> to vector<16x1xf32>
    %54 = tpu.reciprocal %53 {approx = true} : vector<16x1xf32> -> vector<16x1xf32>
    %55 = vector.broadcast %54 : vector<16x1xf32> to vector<16x16xf32>
    %56 = arith.mulf %51, %55 : vector<16x16xf32>
    %cst_31 = arith.constant dense<0.000000e+00> : vector<16x8xf32>
    %57 = tpu.matmul %56, %42, %cst_31 {dimension_numbers = #tpu.dot_dimension_numbers<[1], [0], [0], [1], [0, 0, 1, 1], [], []>} : vector<16x16xf32>, vector<16x8xf32>, vector<16x8xf32> -> vector<16x8xf32>
    %58 = vector.extract_strided_slice %39 {offsets = [0, 8], sizes = [16, 8], strides = [1, 1]} : vector<16x96xf32> to vector<16x8xf32>
    %59 = vector.extract_strided_slice %39 {offsets = [0, 40], sizes = [16, 8], strides = [1, 1]} : vector<16x96xf32> to vector<16x8xf32>
    %60 = vector.extract_strided_slice %39 {offsets = [0, 72], sizes = [16, 8], strides = [1, 1]} : vector<16x96xf32> to vector<16x8xf32>
    %cst_32 = arith.constant dense<0.000000e+00> : vector<16x16xf32>
    %61 = tpu.matmul %58, %59, %cst_32 {dimension_numbers = #tpu.dot_dimension_numbers<[1], [1], [0], [0], [0, 0, 1, 0], [], []>} : vector<16x8xf32>, vector<16x8xf32>, vector<16x16xf32> -> vector<16x16xf32>
    %cst_33 = arith.constant 0.353553385 : f32
    %62 = vector.broadcast %cst_33 : f32 to vector<16x16xf32>
    %63 = arith.mulf %61, %62 : vector<16x16xf32>
    %64 = arith.addf %63, %1 : vector<16x16xf32>
    %cst_34 = arith.constant dense<0xFF800000> : vector<16xf32>
    %65 = vector.multi_reduction <maximumf>, %64, %cst_34 [1] : vector<16x16xf32> to vector<16xf32>
    %66 = vector.shape_cast %65 : vector<16xf32> to vector<16x1xf32>
    %67 = vector.broadcast %66 : vector<16x1xf32> to vector<16x16xf32>
    %68 = arith.subf %64, %67 : vector<16x16xf32>
    %69 = math.exp %68 : vector<16x16xf32>
    %cst_35 = arith.constant dense<0.000000e+00> : vector<16xf32>
    %70 = vector.multi_reduction <add>, %69, %cst_35 [1] : vector<16x16xf32> to vector<16xf32>
    %71 = vector.shape_cast %70 : vector<16xf32> to vector<16x1xf32>
    %72 = tpu.reciprocal %71 {approx = true} : vector<16x1xf32> -> vector<16x1xf32>
    %73 = vector.broadcast %72 : vector<16x1xf32> to vector<16x16xf32>
    %74 = arith.mulf %69, %73 : vector<16x16xf32>
    %cst_36 = arith.constant dense<0.000000e+00> : vector<16x8xf32>
    %75 = tpu.matmul %74, %60, %cst_36 {dimension_numbers = #tpu.dot_dimension_numbers<[1], [0], [0], [1], [0, 0, 1, 1], [], []>} : vector<16x16xf32>, vector<16x8xf32>, vector<16x8xf32> -> vector<16x8xf32>
    %76 = vector.extract_strided_slice %39 {offsets = [0, 16], sizes = [16, 8], strides = [1, 1]} : vector<16x96xf32> to vector<16x8xf32>
    %77 = vector.extract_strided_slice %39 {offsets = [0, 48], sizes = [16, 8], strides = [1, 1]} : vector<16x96xf32> to vector<16x8xf32>
    %78 = vector.extract_strided_slice %39 {offsets = [0, 80], sizes = [16, 8], strides = [1, 1]} : vector<16x96xf32> to vector<16x8xf32>
    %cst_37 = arith.constant dense<0.000000e+00> : vector<16x16xf32>
    %79 = tpu.matmul %76, %77, %cst_37 {dimension_numbers = #tpu.dot_dimension_numbers<[1], [1], [0], [0], [0, 0, 1, 0], [], []>} : vector<16x8xf32>, vector<16x8xf32>, vector<16x16xf32> -> vector<16x16xf32>
    %cst_38 = arith.constant 0.353553385 : f32
    %80 = vector.broadcast %cst_38 : f32 to vector<16x16xf32>
    %81 = arith.mulf %79, %80 : vector<16x16xf32>
    %82 = arith.addf %81, %1 : vector<16x16xf32>
    %cst_39 = arith.constant dense<0xFF800000> : vector<16xf32>
    %83 = vector.multi_reduction <maximumf>, %82, %cst_39 [1] : vector<16x16xf32> to vector<16xf32>
    %84 = vector.shape_cast %83 : vector<16xf32> to vector<16x1xf32>
    %85 = vector.broadcast %84 : vector<16x1xf32> to vector<16x16xf32>
    %86 = arith.subf %82, %85 : vector<16x16xf32>
    %87 = math.exp %86 : vector<16x16xf32>
    %cst_40 = arith.constant dense<0.000000e+00> : vector<16xf32>
    %88 = vector.multi_reduction <add>, %87, %cst_40 [1] : vector<16x16xf32> to vector<16xf32>
    %89 = vector.shape_cast %88 : vector<16xf32> to vector<16x1xf32>
    %90 = tpu.reciprocal %89 {approx = true} : vector<16x1xf32> -> vector<16x1xf32>
    %91 = vector.broadcast %90 : vector<16x1xf32> to vector<16x16xf32>
    %92 = arith.mulf %87, %91 : vector<16x16xf32>
    %cst_41 = arith.constant dense<0.000000e+00> : vector<16x8xf32>
    %93 = tpu.matmul %92, %78, %cst_41 {dimension_numbers = #tpu.dot_dimension_numbers<[1], [0], [0], [1], [0, 0, 1, 1], [], []>} : vector<16x16xf32>, vector<16x8xf32>, vector<16x8xf32> -> vector<16x8xf32>
    %94 = vector.extract_strided_slice %39 {offsets = [0, 24], sizes = [16, 8], strides = [1, 1]} : vector<16x96xf32> to vector<16x8xf32>
    %95 = vector.extract_strided_slice %39 {offsets = [0, 56], sizes = [16, 8], strides = [1, 1]} : vector<16x96xf32> to vector<16x8xf32>
    %96 = vector.extract_strided_slice %39 {offsets = [0, 88], sizes = [16, 8], strides = [1, 1]} : vector<16x96xf32> to vector<16x8xf32>
    %cst_42 = arith.constant dense<0.000000e+00> : vector<16x16xf32>
    %97 = tpu.matmul %94, %95, %cst_42 {dimension_numbers = #tpu.dot_dimension_numbers<[1], [1], [0], [0], [0, 0, 1, 0], [], []>} : vector<16x8xf32>, vector<16x8xf32>, vector<16x16xf32> -> vector<16x16xf32>
    %cst_43 = arith.constant 0.353553385 : f32
    %98 = vector.broadcast %cst_43 : f32 to vector<16x16xf32>
    %99 = arith.mulf %97, %98 : vector<16x16xf32>
    %100 = arith.addf %99, %1 : vector<16x16xf32>
    %cst_44 = arith.constant dense<0xFF800000> : vector<16xf32>
    %101 = vector.multi_reduction <maximumf>, %100, %cst_44 [1] : vector<16x16xf32> to vector<16xf32>
    %102 = vector.shape_cast %101 : vector<16xf32> to vector<16x1xf32>
    %103 = vector.broadcast %102 : vector<16x1xf32> to vector<16x16xf32>
    %104 = arith.subf %100, %103 : vector<16x16xf32>
    %105 = math.exp %104 : vector<16x16xf32>
    %cst_45 = arith.constant dense<0.000000e+00> : vector<16xf32>
    %106 = vector.multi_reduction <add>, %105, %cst_45 [1] : vector<16x16xf32> to vector<16xf32>
    %107 = vector.shape_cast %106 : vector<16xf32> to vector<16x1xf32>
    %108 = tpu.reciprocal %107 {approx = true} : vector<16x1xf32> -> vector<16x1xf32>
    %109 = vector.broadcast %108 : vector<16x1xf32> to vector<16x16xf32>
    %110 = arith.mulf %105, %109 : vector<16x16xf32>
    %cst_46 = arith.constant dense<0.000000e+00> : vector<16x8xf32>
    %111 = tpu.matmul %110, %96, %cst_46 {dimension_numbers = #tpu.dot_dimension_numbers<[1], [0], [0], [1], [0, 0, 1, 1], [], []>} : vector<16x16xf32>, vector<16x8xf32>, vector<16x8xf32> -> vector<16x8xf32>
    %112 = tpu.concatenate %57, %75, %93, %111 in 1 : vector<16x8xf32>, vector<16x8xf32>, vector<16x8xf32>, vector<16x8xf32> -> vector<16x32xf32>
    %113 = arith.truncf %112 : vector<16x32xf32> to vector<16x32xbf16>
    %cst_47 = arith.constant dense<0.000000e+00> : vector<16x32xf32>
    %114 = tpu.matmul %113, %11, %cst_47 {dimension_numbers = #tpu.dot_dimension_numbers<[1], [0], [0], [1], [0, 0, 1, 1], [], []>} : vector<16x32xbf16>, vector<32x32xbf16>, vector<16x32xf32> -> vector<16x32xf32>
    %115 = vector.broadcast %7 : vector<1x32xf32> to vector<16x32xf32>
    %116 = arith.addf %114, %115 : vector<16x32xf32>
    %117 = arith.addf %0, %116 : vector<16x32xf32>
    %cst_48 = arith.constant dense<0.000000e+00> : vector<16xf32>
    %118 = vector.multi_reduction <add>, %117, %cst_48 [1] : vector<16x32xf32> to vector<16xf32>
    %119 = vector.shape_cast %118 : vector<16xf32> to vector<16x1xf32>
    %cst_49 = arith.constant 3.200000e+01 : f32
    %120 = vector.broadcast %cst_49 : f32 to vector<16x1xf32>
    %121 = arith.divf %119, %120 : vector<16x1xf32>
    %122 = vector.broadcast %121 : vector<16x1xf32> to vector<16x32xf32>
    %123 = arith.subf %117, %122 : vector<16x32xf32>
    %124 = arith.mulf %123, %123 : vector<16x32xf32>
    %cst_50 = arith.constant dense<0.000000e+00> : vector<16xf32>
    %125 = vector.multi_reduction <add>, %124, %cst_50 [1] : vector<16x32xf32> to vector<16xf32>
    %126 = vector.shape_cast %125 : vector<16xf32> to vector<16x1xf32>
    %cst_51 = arith.constant 3.200000e+01 : f32
    %127 = vector.broadcast %cst_51 : f32 to vector<16x1xf32>
    %128 = arith.divf %126, %127 : vector<16x1xf32>
    %129 = vector.broadcast %121 : vector<16x1xf32> to vector<16x32xf32>
    %130 = arith.subf %117, %129 : vector<16x32xf32>
    %cst_52 = arith.constant 9.99999997E-7 : f32
    %131 = vector.broadcast %cst_52 : f32 to vector<16x1xf32>
    %132 = arith.addf %128, %131 : vector<16x1xf32>
    %133 = math.rsqrt %132 : vector<16x1xf32>
    %134 = vector.broadcast %133 : vector<16x1xf32> to vector<16x32xf32>
    %135 = arith.mulf %130, %134 : vector<16x32xf32>
    %136 = vector.broadcast %4 : vector<1x32xf32> to vector<16x32xf32>
    %137 = arith.mulf %135, %136 : vector<16x32xf32>
    %138 = vector.broadcast %5 : vector<1x32xf32> to vector<16x32xf32>
    %139 = arith.addf %137, %138 : vector<16x32xf32>
    %140 = arith.truncf %139 : vector<16x32xf32> to vector<16x32xbf16>
    %cst_53 = arith.constant dense<0.000000e+00> : vector<16x64xf32>
    %141 = tpu.matmul %140, %12, %cst_53 {dimension_numbers = #tpu.dot_dimension_numbers<[1], [0], [0], [1], [0, 0, 1, 1], [], []>} : vector<16x32xbf16>, vector<32x64xbf16>, vector<16x64xf32> -> vector<16x64xf32>
    %142 = vector.broadcast %8 : vector<1x64xf32> to vector<16x64xf32>
    %143 = arith.addf %141, %142 : vector<16x64xf32>
    %cst_54 = arith.constant 0.000000e+00 : f32
    %144 = vector.broadcast %cst_54 : f32 to vector<16x64xf32>
    %145 = arith.maximumf %143, %144 : vector<16x64xf32>
    %146 = arith.truncf %145 : vector<16x64xf32> to vector<16x64xbf16>
    %cst_55 = arith.constant dense<0.000000e+00> : vector<16x32xf32>
    %147 = tpu.matmul %146, %13, %cst_55 {dimension_numbers = #tpu.dot_dimension_numbers<[1], [1], [0], [0], [0, 0, 1, 0], [], []>} : vector<16x64xbf16>, vector<32x64xbf16>, vector<16x32xf32> -> vector<16x32xf32>
    %148 = vector.broadcast %9 : vector<1x32xf32> to vector<16x32xf32>
    %149 = arith.addf %147, %148 : vector<16x32xf32>
    %150 = arith.addf %117, %149 : vector<16x32xf32>
    %c3 = arith.constant 3 : index
    %c0_56 = arith.constant 0 : index
    %151 = vector.load %arg3[%c3, %c0_56] : memref<7x128xf32, #tpu.memory_space<vmem>>, vector<1x32xf32>
    %c3_57 = arith.constant 3 : index
    %c32_58 = arith.constant 32 : index
    %152 = vector.load %arg3[%c3_57, %c32_58] : memref<7x128xf32, #tpu.memory_space<vmem>>, vector<1x32xf32>
    %c3_59 = arith.constant 3 : index
    %c64_60 = arith.constant 64 : index
    %153 = vector.load %arg3[%c3_59, %c64_60] : memref<7x128xf32, #tpu.memory_space<vmem>>, vector<1x32xf32>
    %c3_61 = arith.constant 3 : index
    %c96_62 = arith.constant 96 : index
    %154 = vector.load %arg3[%c3_61, %c96_62] : memref<7x128xf32, #tpu.memory_space<vmem>>, vector<1x32xf32>
    %c4 = arith.constant 4 : index
    %c0_63 = arith.constant 0 : index
    %155 = vector.load %arg3[%c4, %c0_63] : memref<7x128xf32, #tpu.memory_space<vmem>>, vector<1x96xf32>
    %c4_64 = arith.constant 4 : index
    %c96_65 = arith.constant 96 : index
    %156 = vector.load %arg3[%c4_64, %c96_65] : memref<7x128xf32, #tpu.memory_space<vmem>>, vector<1x32xf32>
    %c5 = arith.constant 5 : index
    %c0_66 = arith.constant 0 : index
    %157 = vector.load %arg3[%c5, %c0_66] : memref<7x128xf32, #tpu.memory_space<vmem>>, vector<1x64xf32>
    %c5_67 = arith.constant 5 : index
    %c64_68 = arith.constant 64 : index
    %158 = vector.load %arg3[%c5_67, %c64_68] : memref<7x128xf32, #tpu.memory_space<vmem>>, vector<1x32xf32>
    %c64_69 = arith.constant 64 : index
    %c0_70 = arith.constant 0 : index
    %159 = vector.load %arg2[%c64_69, %c0_70] : memref<128x128xbf16, #tpu.memory_space<vmem>>, vector<32x96xbf16>
    %c64_71 = arith.constant 64 : index
    %c96_72 = arith.constant 96 : index
    %160 = vector.load %arg2[%c64_71, %c96_72] : memref<128x128xbf16, #tpu.memory_space<vmem>>, vector<32x32xbf16>
    %c96_73 = arith.constant 96 : index
    %c0_74 = arith.constant 0 : index
    %161 = vector.load %arg2[%c96_73, %c0_74] : memref<128x128xbf16, #tpu.memory_space<vmem>>, vector<32x64xbf16>
    %c96_75 = arith.constant 96 : index
    %c64_76 = arith.constant 64 : index
    %162 = vector.load %arg2[%c96_75, %c64_76] : memref<128x128xbf16, #tpu.memory_space<vmem>>, vector<32x64xbf16>
    %cst_77 = arith.constant dense<0.000000e+00> : vector<16xf32>
    %163 = vector.multi_reduction <add>, %150, %cst_77 [1] : vector<16x32xf32> to vector<16xf32>
    %164 = vector.shape_cast %163 : vector<16xf32> to vector<16x1xf32>
    %cst_78 = arith.constant 3.200000e+01 : f32
    %165 = vector.broadcast %cst_78 : f32 to vector<16x1xf32>
    %166 = arith.divf %164, %165 : vector<16x1xf32>
    %167 = vector.broadcast %166 : vector<16x1xf32> to vector<16x32xf32>
    %168 = arith.subf %150, %167 : vector<16x32xf32>
    %169 = arith.mulf %168, %168 : vector<16x32xf32>
    %cst_79 = arith.constant dense<0.000000e+00> : vector<16xf32>
    %170 = vector.multi_reduction <add>, %169, %cst_79 [1] : vector<16x32xf32> to vector<16xf32>
    %171 = vector.shape_cast %170 : vector<16xf32> to vector<16x1xf32>
    %cst_80 = arith.constant 3.200000e+01 : f32
    %172 = vector.broadcast %cst_80 : f32 to vector<16x1xf32>
    %173 = arith.divf %171, %172 : vector<16x1xf32>
    %174 = vector.broadcast %166 : vector<16x1xf32> to vector<16x32xf32>
    %175 = arith.subf %150, %174 : vector<16x32xf32>
    %cst_81 = arith.constant 9.99999997E-7 : f32
    %176 = vector.broadcast %cst_81 : f32 to vector<16x1xf32>
    %177 = arith.addf %173, %176 : vector<16x1xf32>
    %178 = math.rsqrt %177 : vector<16x1xf32>
    %179 = vector.broadcast %178 : vector<16x1xf32> to vector<16x32xf32>
    %180 = arith.mulf %175, %179 : vector<16x32xf32>
    %181 = vector.broadcast %151 : vector<1x32xf32> to vector<16x32xf32>
    %182 = arith.mulf %180, %181 : vector<16x32xf32>
    %183 = vector.broadcast %152 : vector<1x32xf32> to vector<16x32xf32>
    %184 = arith.addf %182, %183 : vector<16x32xf32>
    %185 = arith.truncf %184 : vector<16x32xf32> to vector<16x32xbf16>
    %cst_82 = arith.constant dense<0.000000e+00> : vector<16x96xf32>
    %186 = tpu.matmul %185, %159, %cst_82 {dimension_numbers = #tpu.dot_dimension_numbers<[1], [0], [0], [1], [0, 0, 1, 1], [], []>} : vector<16x32xbf16>, vector<32x96xbf16>, vector<16x96xf32> -> vector<16x96xf32>
    %187 = vector.broadcast %155 : vector<1x96xf32> to vector<16x96xf32>
    %188 = arith.addf %186, %187 : vector<16x96xf32>
    %189 = vector.extract_strided_slice %188 {offsets = [0, 0], sizes = [16, 8], strides = [1, 1]} : vector<16x96xf32> to vector<16x8xf32>
    %190 = vector.extract_strided_slice %188 {offsets = [0, 32], sizes = [16, 8], strides = [1, 1]} : vector<16x96xf32> to vector<16x8xf32>
    %191 = vector.extract_strided_slice %188 {offsets = [0, 64], sizes = [16, 8], strides = [1, 1]} : vector<16x96xf32> to vector<16x8xf32>
    %cst_83 = arith.constant dense<0.000000e+00> : vector<16x16xf32>
    %192 = tpu.matmul %189, %190, %cst_83 {dimension_numbers = #tpu.dot_dimension_numbers<[1], [1], [0], [0], [0, 0, 1, 0], [], []>} : vector<16x8xf32>, vector<16x8xf32>, vector<16x16xf32> -> vector<16x16xf32>
    %cst_84 = arith.constant 0.353553385 : f32
    %193 = vector.broadcast %cst_84 : f32 to vector<16x16xf32>
    %194 = arith.mulf %192, %193 : vector<16x16xf32>
    %195 = arith.addf %194, %1 : vector<16x16xf32>
    %cst_85 = arith.constant dense<0xFF800000> : vector<16xf32>
    %196 = vector.multi_reduction <maximumf>, %195, %cst_85 [1] : vector<16x16xf32> to vector<16xf32>
    %197 = vector.shape_cast %196 : vector<16xf32> to vector<16x1xf32>
    %198 = vector.broadcast %197 : vector<16x1xf32> to vector<16x16xf32>
    %199 = arith.subf %195, %198 : vector<16x16xf32>
    %200 = math.exp %199 : vector<16x16xf32>
    %cst_86 = arith.constant dense<0.000000e+00> : vector<16xf32>
    %201 = vector.multi_reduction <add>, %200, %cst_86 [1] : vector<16x16xf32> to vector<16xf32>
    %202 = vector.shape_cast %201 : vector<16xf32> to vector<16x1xf32>
    %203 = tpu.reciprocal %202 {approx = true} : vector<16x1xf32> -> vector<16x1xf32>
    %204 = vector.broadcast %203 : vector<16x1xf32> to vector<16x16xf32>
    %205 = arith.mulf %200, %204 : vector<16x16xf32>
    %cst_87 = arith.constant dense<0.000000e+00> : vector<16x8xf32>
    %206 = tpu.matmul %205, %191, %cst_87 {dimension_numbers = #tpu.dot_dimension_numbers<[1], [0], [0], [1], [0, 0, 1, 1], [], []>} : vector<16x16xf32>, vector<16x8xf32>, vector<16x8xf32> -> vector<16x8xf32>
    %207 = vector.extract_strided_slice %188 {offsets = [0, 8], sizes = [16, 8], strides = [1, 1]} : vector<16x96xf32> to vector<16x8xf32>
    %208 = vector.extract_strided_slice %188 {offsets = [0, 40], sizes = [16, 8], strides = [1, 1]} : vector<16x96xf32> to vector<16x8xf32>
    %209 = vector.extract_strided_slice %188 {offsets = [0, 72], sizes = [16, 8], strides = [1, 1]} : vector<16x96xf32> to vector<16x8xf32>
    %cst_88 = arith.constant dense<0.000000e+00> : vector<16x16xf32>
    %210 = tpu.matmul %207, %208, %cst_88 {dimension_numbers = #tpu.dot_dimension_numbers<[1], [1], [0], [0], [0, 0, 1, 0], [], []>} : vector<16x8xf32>, vector<16x8xf32>, vector<16x16xf32> -> vector<16x16xf32>
    %cst_89 = arith.constant 0.353553385 : f32
    %211 = vector.broadcast %cst_89 : f32 to vector<16x16xf32>
    %212 = arith.mulf %210, %211 : vector<16x16xf32>
    %213 = arith.addf %212, %1 : vector<16x16xf32>
    %cst_90 = arith.constant dense<0xFF800000> : vector<16xf32>
    %214 = vector.multi_reduction <maximumf>, %213, %cst_90 [1] : vector<16x16xf32> to vector<16xf32>
    %215 = vector.shape_cast %214 : vector<16xf32> to vector<16x1xf32>
    %216 = vector.broadcast %215 : vector<16x1xf32> to vector<16x16xf32>
    %217 = arith.subf %213, %216 : vector<16x16xf32>
    %218 = math.exp %217 : vector<16x16xf32>
    %cst_91 = arith.constant dense<0.000000e+00> : vector<16xf32>
    %219 = vector.multi_reduction <add>, %218, %cst_91 [1] : vector<16x16xf32> to vector<16xf32>
    %220 = vector.shape_cast %219 : vector<16xf32> to vector<16x1xf32>
    %221 = tpu.reciprocal %220 {approx = true} : vector<16x1xf32> -> vector<16x1xf32>
    %222 = vector.broadcast %221 : vector<16x1xf32> to vector<16x16xf32>
    %223 = arith.mulf %218, %222 : vector<16x16xf32>
    %cst_92 = arith.constant dense<0.000000e+00> : vector<16x8xf32>
    %224 = tpu.matmul %223, %209, %cst_92 {dimension_numbers = #tpu.dot_dimension_numbers<[1], [0], [0], [1], [0, 0, 1, 1], [], []>} : vector<16x16xf32>, vector<16x8xf32>, vector<16x8xf32> -> vector<16x8xf32>
    %225 = vector.extract_strided_slice %188 {offsets = [0, 16], sizes = [16, 8], strides = [1, 1]} : vector<16x96xf32> to vector<16x8xf32>
    %226 = vector.extract_strided_slice %188 {offsets = [0, 48], sizes = [16, 8], strides = [1, 1]} : vector<16x96xf32> to vector<16x8xf32>
    %227 = vector.extract_strided_slice %188 {offsets = [0, 80], sizes = [16, 8], strides = [1, 1]} : vector<16x96xf32> to vector<16x8xf32>
    %cst_93 = arith.constant dense<0.000000e+00> : vector<16x16xf32>
    %228 = tpu.matmul %225, %226, %cst_93 {dimension_numbers = #tpu.dot_dimension_numbers<[1], [1], [0], [0], [0, 0, 1, 0], [], []>} : vector<16x8xf32>, vector<16x8xf32>, vector<16x16xf32> -> vector<16x16xf32>
    %cst_94 = arith.constant 0.353553385 : f32
    %229 = vector.broadcast %cst_94 : f32 to vector<16x16xf32>
    %230 = arith.mulf %228, %229 : vector<16x16xf32>
    %231 = arith.addf %230, %1 : vector<16x16xf32>
    %cst_95 = arith.constant dense<0xFF800000> : vector<16xf32>
    %232 = vector.multi_reduction <maximumf>, %231, %cst_95 [1] : vector<16x16xf32> to vector<16xf32>
    %233 = vector.shape_cast %232 : vector<16xf32> to vector<16x1xf32>
    %234 = vector.broadcast %233 : vector<16x1xf32> to vector<16x16xf32>
    %235 = arith.subf %231, %234 : vector<16x16xf32>
    %236 = math.exp %235 : vector<16x16xf32>
    %cst_96 = arith.constant dense<0.000000e+00> : vector<16xf32>
    %237 = vector.multi_reduction <add>, %236, %cst_96 [1] : vector<16x16xf32> to vector<16xf32>
    %238 = vector.shape_cast %237 : vector<16xf32> to vector<16x1xf32>
    %239 = tpu.reciprocal %238 {approx = true} : vector<16x1xf32> -> vector<16x1xf32>
    %240 = vector.broadcast %239 : vector<16x1xf32> to vector<16x16xf32>
    %241 = arith.mulf %236, %240 : vector<16x16xf32>
    %cst_97 = arith.constant dense<0.000000e+00> : vector<16x8xf32>
    %242 = tpu.matmul %241, %227, %cst_97 {dimension_numbers = #tpu.dot_dimension_numbers<[1], [0], [0], [1], [0, 0, 1, 1], [], []>} : vector<16x16xf32>, vector<16x8xf32>, vector<16x8xf32> -> vector<16x8xf32>
    %243 = vector.extract_strided_slice %188 {offsets = [0, 24], sizes = [16, 8], strides = [1, 1]} : vector<16x96xf32> to vector<16x8xf32>
    %244 = vector.extract_strided_slice %188 {offsets = [0, 56], sizes = [16, 8], strides = [1, 1]} : vector<16x96xf32> to vector<16x8xf32>
    %245 = vector.extract_strided_slice %188 {offsets = [0, 88], sizes = [16, 8], strides = [1, 1]} : vector<16x96xf32> to vector<16x8xf32>
    %cst_98 = arith.constant dense<0.000000e+00> : vector<16x16xf32>
    %246 = tpu.matmul %243, %244, %cst_98 {dimension_numbers = #tpu.dot_dimension_numbers<[1], [1], [0], [0], [0, 0, 1, 0], [], []>} : vector<16x8xf32>, vector<16x8xf32>, vector<16x16xf32> -> vector<16x16xf32>
    %cst_99 = arith.constant 0.353553385 : f32
    %247 = vector.broadcast %cst_99 : f32 to vector<16x16xf32>
    %248 = arith.mulf %246, %247 : vector<16x16xf32>
    %249 = arith.addf %248, %1 : vector<16x16xf32>
    %cst_100 = arith.constant dense<0xFF800000> : vector<16xf32>
    %250 = vector.multi_reduction <maximumf>, %249, %cst_100 [1] : vector<16x16xf32> to vector<16xf32>
    %251 = vector.shape_cast %250 : vector<16xf32> to vector<16x1xf32>
    %252 = vector.broadcast %251 : vector<16x1xf32> to vector<16x16xf32>
    %253 = arith.subf %249, %252 : vector<16x16xf32>
    %254 = math.exp %253 : vector<16x16xf32>
    %cst_101 = arith.constant dense<0.000000e+00> : vector<16xf32>
    %255 = vector.multi_reduction <add>, %254, %cst_101 [1] : vector<16x16xf32> to vector<16xf32>
    %256 = vector.shape_cast %255 : vector<16xf32> to vector<16x1xf32>
    %257 = tpu.reciprocal %256 {approx = true} : vector<16x1xf32> -> vector<16x1xf32>
    %258 = vector.broadcast %257 : vector<16x1xf32> to vector<16x16xf32>
    %259 = arith.mulf %254, %258 : vector<16x16xf32>
    %cst_102 = arith.constant dense<0.000000e+00> : vector<16x8xf32>
    %260 = tpu.matmul %259, %245, %cst_102 {dimension_numbers = #tpu.dot_dimension_numbers<[1], [0], [0], [1], [0, 0, 1, 1], [], []>} : vector<16x16xf32>, vector<16x8xf32>, vector<16x8xf32> -> vector<16x8xf32>
    %261 = tpu.concatenate %206, %224, %242, %260 in 1 : vector<16x8xf32>, vector<16x8xf32>, vector<16x8xf32>, vector<16x8xf32> -> vector<16x32xf32>
    %262 = arith.truncf %261 : vector<16x32xf32> to vector<16x32xbf16>
    %cst_103 = arith.constant dense<0.000000e+00> : vector<16x32xf32>
    %263 = tpu.matmul %262, %160, %cst_103 {dimension_numbers = #tpu.dot_dimension_numbers<[1], [0], [0], [1], [0, 0, 1, 1], [], []>} : vector<16x32xbf16>, vector<32x32xbf16>, vector<16x32xf32> -> vector<16x32xf32>
    %264 = vector.broadcast %156 : vector<1x32xf32> to vector<16x32xf32>
    %265 = arith.addf %263, %264 : vector<16x32xf32>
    %266 = arith.addf %150, %265 : vector<16x32xf32>
    %cst_104 = arith.constant dense<0.000000e+00> : vector<16xf32>
    %267 = vector.multi_reduction <add>, %266, %cst_104 [1] : vector<16x32xf32> to vector<16xf32>
    %268 = vector.shape_cast %267 : vector<16xf32> to vector<16x1xf32>
    %cst_105 = arith.constant 3.200000e+01 : f32
    %269 = vector.broadcast %cst_105 : f32 to vector<16x1xf32>
    %270 = arith.divf %268, %269 : vector<16x1xf32>
    %271 = vector.broadcast %270 : vector<16x1xf32> to vector<16x32xf32>
    %272 = arith.subf %266, %271 : vector<16x32xf32>
    %273 = arith.mulf %272, %272 : vector<16x32xf32>
    %cst_106 = arith.constant dense<0.000000e+00> : vector<16xf32>
    %274 = vector.multi_reduction <add>, %273, %cst_106 [1] : vector<16x32xf32> to vector<16xf32>
    %275 = vector.shape_cast %274 : vector<16xf32> to vector<16x1xf32>
    %cst_107 = arith.constant 3.200000e+01 : f32
    %276 = vector.broadcast %cst_107 : f32 to vector<16x1xf32>
    %277 = arith.divf %275, %276 : vector<16x1xf32>
    %278 = vector.broadcast %270 : vector<16x1xf32> to vector<16x32xf32>
    %279 = arith.subf %266, %278 : vector<16x32xf32>
    %cst_108 = arith.constant 9.99999997E-7 : f32
    %280 = vector.broadcast %cst_108 : f32 to vector<16x1xf32>
    %281 = arith.addf %277, %280 : vector<16x1xf32>
    %282 = math.rsqrt %281 : vector<16x1xf32>
    %283 = vector.broadcast %282 : vector<16x1xf32> to vector<16x32xf32>
    %284 = arith.mulf %279, %283 : vector<16x32xf32>
    %285 = vector.broadcast %153 : vector<1x32xf32> to vector<16x32xf32>
    %286 = arith.mulf %284, %285 : vector<16x32xf32>
    %287 = vector.broadcast %154 : vector<1x32xf32> to vector<16x32xf32>
    %288 = arith.addf %286, %287 : vector<16x32xf32>
    %289 = arith.truncf %288 : vector<16x32xf32> to vector<16x32xbf16>
    %cst_109 = arith.constant dense<0.000000e+00> : vector<16x64xf32>
    %290 = tpu.matmul %289, %161, %cst_109 {dimension_numbers = #tpu.dot_dimension_numbers<[1], [0], [0], [1], [0, 0, 1, 1], [], []>} : vector<16x32xbf16>, vector<32x64xbf16>, vector<16x64xf32> -> vector<16x64xf32>
    %291 = vector.broadcast %157 : vector<1x64xf32> to vector<16x64xf32>
    %292 = arith.addf %290, %291 : vector<16x64xf32>
    %cst_110 = arith.constant 0.000000e+00 : f32
    %293 = vector.broadcast %cst_110 : f32 to vector<16x64xf32>
    %294 = arith.maximumf %292, %293 : vector<16x64xf32>
    %295 = arith.truncf %294 : vector<16x64xf32> to vector<16x64xbf16>
    %cst_111 = arith.constant dense<0.000000e+00> : vector<16x32xf32>
    %296 = tpu.matmul %295, %162, %cst_111 {dimension_numbers = #tpu.dot_dimension_numbers<[1], [1], [0], [0], [0, 0, 1, 0], [], []>} : vector<16x64xbf16>, vector<32x64xbf16>, vector<16x32xf32> -> vector<16x32xf32>
    %297 = vector.broadcast %158 : vector<1x32xf32> to vector<16x32xf32>
    %298 = arith.addf %296, %297 : vector<16x32xf32>
    %299 = arith.addf %266, %298 : vector<16x32xf32>
    %c6 = arith.constant 6 : index
    %c0_112 = arith.constant 0 : index
    %300 = vector.load %arg3[%c6, %c0_112] : memref<7x128xf32, #tpu.memory_space<vmem>>, vector<1x32xf32>
    %c6_113 = arith.constant 6 : index
    %c32_114 = arith.constant 32 : index
    %301 = vector.load %arg3[%c6_113, %c32_114] : memref<7x128xf32, #tpu.memory_space<vmem>>, vector<1x32xf32>
    %cst_115 = arith.constant dense<0.000000e+00> : vector<16xf32>
    %302 = vector.multi_reduction <add>, %299, %cst_115 [1] : vector<16x32xf32> to vector<16xf32>
    %303 = vector.shape_cast %302 : vector<16xf32> to vector<16x1xf32>
    %cst_116 = arith.constant 3.200000e+01 : f32
    %304 = vector.broadcast %cst_116 : f32 to vector<16x1xf32>
    %305 = arith.divf %303, %304 : vector<16x1xf32>
    %306 = vector.broadcast %305 : vector<16x1xf32> to vector<16x32xf32>
    %307 = arith.subf %299, %306 : vector<16x32xf32>
    %308 = arith.mulf %307, %307 : vector<16x32xf32>
    %cst_117 = arith.constant dense<0.000000e+00> : vector<16xf32>
    %309 = vector.multi_reduction <add>, %308, %cst_117 [1] : vector<16x32xf32> to vector<16xf32>
    %310 = vector.shape_cast %309 : vector<16xf32> to vector<16x1xf32>
    %cst_118 = arith.constant 3.200000e+01 : f32
    %311 = vector.broadcast %cst_118 : f32 to vector<16x1xf32>
    %312 = arith.divf %310, %311 : vector<16x1xf32>
    %313 = vector.broadcast %305 : vector<16x1xf32> to vector<16x32xf32>
    %314 = arith.subf %299, %313 : vector<16x32xf32>
    %cst_119 = arith.constant 9.99999997E-7 : f32
    %315 = vector.broadcast %cst_119 : f32 to vector<16x1xf32>
    %316 = arith.addf %312, %315 : vector<16x1xf32>
    %317 = math.rsqrt %316 : vector<16x1xf32>
    %318 = vector.broadcast %317 : vector<16x1xf32> to vector<16x32xf32>
    %319 = arith.mulf %314, %318 : vector<16x32xf32>
    %320 = vector.broadcast %300 : vector<1x32xf32> to vector<16x32xf32>
    %321 = arith.mulf %319, %320 : vector<16x32xf32>
    %322 = vector.broadcast %301 : vector<1x32xf32> to vector<16x32xf32>
    %323 = arith.addf %321, %322 : vector<16x32xf32>
    %c0_120 = arith.constant 0 : index
    %c0_121 = arith.constant 0 : index
    %324 = vector.load %arg4[%c0_120, %c0_121] : memref<16x32xf32, #tpu.memory_space<vmem>>, vector<16x32xf32>
    tpu.vector_store %arg4[%c0_120, %c0_121], %323 {strides = array<i32>} : memref<16x32xf32, #tpu.memory_space<vmem>>, vector<16x32xf32>,
    return
  }
}

</mosaic_0001>

<llo_original>
// kernel: eq.8
$region0: #{eq.8}
  %s0 = inlined_call_operand.vmem [shape: s32[2,8], index: 0, kind: input, shape index: {}]
  %s1 = inlined_call_operand.vmem [shape: s32[16], index: 1, kind: output, shape index: {}]
  $region1: #{eq.8} parent=0
    #allocation0 [shape = 'u8[4096]{0}', space=vmem, size = 0x1000, scoped, tag = 'scoped mem for output reshape']
    #allocation1 [shape = 'u8[4096]{0}', space=vmem, size = 0x1000, scoped, tag = 'scoped mem for input reshape']
    %s3 = sshllo.u32 0, 2
    %v4 = vld [vmem:[%s0] sm:%s3]
    %5 = vst [vmem:[#allocation1] sm:%s3] %v4
    %v6 = vld [vmem:[#allocation1] sm:$0x1]
    %vm7 = vcmask 64512
    %8 = vst.msk [vmem:[#allocation0] sm:$0x1] %vm7, %v6
    %s9 = scalar_lea.vmem [#allocation1], 1
    %v10 = vld [vmem:[%s9] sm:$0x1]
    %11 = vrot.lane.b32.xlu0 %v10, 8
    %v12 = vpop.permute.xlu0 %11
    %vm13 = vcmask 130112
    %14 = vst.msk [vmem:[#allocation0] sm:$0x1] %vm13, %v12
    %s16 = sshllo.u32 0, 1
    %v18 = vld [vmem:[#allocation0] sm:%s16]
    %s19 = sshllo.u32 0, 1
    %20 = vst [vmem:[%s1] sm:%s19] %v18

// kernel: _lambda_.1
$region0: #{_lambda_.1}
  #allocation0 [shape = 'u32[]', space=smem, size = 0x4, offset = 0x4, fixed_abs, tag = 'smem constant byte address 0x4 - core index']
  #allocation1 [shape = 'u32[144,128]{1,0:T(1,128)}', space=vmem, size = 0x12000, scoped, tag = 'internal scratch']
  %s0 = inlined_call_operand.vmem [shape: f32[16,32], index: 0, kind: input, shape index: {}]
  %s1 = inlined_call_operand.vmem [shape: f32[16,16], index: 1, kind: input, shape index: {}]
  %s2 = inlined_call_operand.hbm [shape: bf16[128,128], index: 2, kind: input, shape index: {}]
  %s3 = inlined_call_operand.vmem [shape: f32[7,128], index: 3, kind: input, shape index: {}]
  %s4 = inlined_call_operand.hbm [shape: f32[16,32], index: 4, kind: output, shape index: {}]
  %s5 = sld [smem:[#allocation0]]
  $region30: #{_lambda_.1} parent=0
    _
  %s7 = ssub.s32 1, %s5
  %s8 = scalar_select 0, %s7, %s5
  $region1: #{_lambda_.1} parent=0
    #allocation2 [shape = 'u8[32768]{0}', space=vmem, size = 0x8000, scoped, tag = 'input window, operand 2, single buffered']
    #allocation3 [shape = 's32[1]{0}', space=sflag, size = 0x4, scoped, tag = 'scoped memory for _lambda_.1']
    #allocation4 [shape = 's32[1]{0}', space=sflag, size = 0x4, scoped, tag = 'scoped memory for _lambda_.1']
    #allocation5 [shape = 'u8[8192]{0}', space=vmem, size = 0x2000, scoped, tag = 'output window, operand 0, single buffered']
    %9 = vsyncpa [#allocation3], 0
    %10 = vsyncpa [#allocation4], 0
    // Predicated region
    $region2: #{_lambda_.1} parent=1 // pred_check
      _
    $region3: #{_lambda_.1} parent=1 // pred_check_branch
      %12 = sbr.rel (0) target = $region5
    $region4: #{_lambda_.1} parent=1 // pred_region
      _
    $region5: #{_lambda_.1} parent=1 // pred_fallthru
      _
    // Predicated region
    $region6: #{_lambda_.1} parent=1 // pred_check
      _
    $region7: #{_lambda_.1} parent=1 // pred_check_branch
      %14 = sbr.rel (0) target = $region9
    $region8: #{_lambda_.1} parent=1 // pred_region
      _
    $region9: #{_lambda_.1} parent=1 // pred_fallthru
      _
    // Predicated region
    $region10: #{_lambda_.1} parent=1 // pred_check
      _
    $region11: #{_lambda_.1} parent=1 // pred_check_branch
      %16 = sbr.rel (0) target = $region13
    $region12: #{_lambda_.1} parent=1 // pred_region
      %s18 = ssub.s32 1024, 1024
      %19 = vsyncadd [#allocation3], %s18
      %s20 = sshll.u32 [#allocation2], 4
      %s21 = int_to_ptr.vmem [resolvable:$true] %s20
      %26 = dma.hbm_to_vmem [thread:$0]  %s2, 1024, %s21, [#allocation3], 64, 64, 4
    $region13: #{_lambda_.1} parent=1 // pred_fallthru
      _
    // Predicated region
    $region14: #{_lambda_.1} parent=1 // pred_check
      _
    $region15: #{_lambda_.1} parent=1 // pred_check_branch
      %28 = sbr.rel (0) target = $region17
    $region16: #{_lambda_.1} parent=1 // pred_region
      _
    $region17: #{_lambda_.1} parent=1 // pred_fallthru
      _
    // Predicated region
    $region18: #{_lambda_.1} parent=1 // pred_check
      _
    $region19: #{_lambda_.1} parent=1 // pred_check_branch
      %30 = sbr.rel (0) target = $region21
    $region20: #{_lambda_.1} parent=1 // pred_region
      %31 = dma.done [#allocation3], 1024
    $region21: #{_lambda_.1} parent=1 // pred_fallthru
      _
    %v33 = vld [vmem:[%s0] sm:$0xff]
    %v34 = vld [vmem:[%s0 + $0x8] sm:$0xff]
    %v35 = vld [vmem:[%s1] sm:$0xff]
    %v36 = vld [vmem:[%s1 + $0x8] sm:$0xff]
    %v37 = vld [vmem:[%s3] sm:$0x1]
    %v38 = vld [vmem:[%s3 + $0x1] sm:$0x1]
    %v39 = vld [vmem:[%s3 + $0x2] sm:$0x1]
    %v40 = vld [vmem:[#allocation2] sm:$0xf]
    %v41 = vld [vmem:[#allocation2 + $0x4] sm:$0xf]
    %v42 = vld [vmem:[#allocation2 + $0x8] sm:$0xf]
    %v43 = vld [vmem:[#allocation2 + $0xc] sm:$0xf]
    %v44 = vld [vmem:[#allocation2 + $0x10] sm:$0xf]
    %v45 = vld [vmem:[#allocation2 + $0x14] sm:$0xf]
    %v46 = vld [vmem:[#allocation2 + $0x18] sm:$0xf]
    %v47 = vld [vmem:[#allocation2 + $0x1c] sm:$0xf]
    %vm48 = vcmask 261120
    %v49 = vsel %vm48, %v33, 0.0
    %50 = vadd.xlane.f32.xlu0 %v49
    %v51 = vpop.xlane.xlu0 %50
    %v52 = vsel %vm48, %v34, 0.0
    %53 = vadd.xlane.f32.xlu0 %v52
    %v54 = vpop.xlane.xlu0 %53
    %v55 = vrcp.pop 32.0
    %v56 = vmul.f32 %v51, %v55
    %v57 = vmul.f32 %v54, %v55
    %v58 = vsub.f32 %v33, %v56
    %v59 = vsub.f32 %v34, %v57
    %v60 = vmul.f32 %v58, %v58
    %v61 = vmul.f32 %v59, %v59
    %v62 = vsel %vm48, %v60, 0.0
    %63 = vadd.xlane.f32.xlu0 %v62
    %v64 = vpop.xlane.xlu0 %63
    %v65 = vsel %vm48, %v61, 0.0
    %66 = vadd.xlane.f32.xlu0 %v65
    %v67 = vpop.xlane.xlu0 %66
    %v68 = vmul.f32 %v64, %v55
    %v69 = vmul.f32 %v67, %v55
    %v70 = vadd.f32 %v68, 1e-06
    %v71 = vadd.f32 %v69, 1e-06
    %v72 = vrsqrt.pop %v70
    %v73 = vrsqrt.pop %v71
    %v74 = vmul.f32 %v58, %v72
    %v75 = vmul.f32 %v59, %v73
    %v76 = vlaneseq
    %v77 = vshrl.u32 %v76, 7
    %v78 = vsub.s32 0, %v77
    %v79 = vrot.slane %v37, %v78
    %v80 = vmul.f32 %v74, %v79
    %v81 = vmul.f32 %v75, %v79
    %83 = vrot.lane.b32.xlu0 %v79, 96
    %v84 = vpop.permute.xlu0 %83
    %v86 = vadd.f32 %v80, %v84
    %v87 = vadd.f32 %v81, %v84
    %v88 = vpack.c.bf16 %v87, %v86
    %v89 = vlaneseq
    %v90 = vshrl.u32 %v89, 7
    %v91 = vsub.s32 0, %v90
    %v92 = vrot.slane %v38, %v91
    %v97 = vunpack.c.l.b16 %v40
    %v98 = vunpack.c.l.b16 %v41
    %v99 = vunpack.c.l.b16 %v42
    %v100 = vunpack.c.l.b16 %v43
    %v101 = vpack.c.b16 %v98, %v97
    %v102 = vpack.c.b16 %v100, %v99
    %v106 = vsel %vm48, %v88, 0
    %108 = vmatprep.subr.bf16.mxu0 0
    %109 = vmatpush1.bf16.msra.mxu0 %v101
    %110 = vmatprep.subr.bf16.mxu0 0
    %111 = vmatpush1.bf16.msra.mxu0 %v102
    %112 = vmatprep.subr.bf16.mxu0 0
    %113 = vmatpush1.bf16.msra.mxu0 0
    %114 = vmatprep.subr.bf16.mxu0 0
    %115 = vmatpush1.bf16.msra.mxu0 0
    %116 = vmatprep.subr.bf16.mxu0 0
    %117 = vmatpush1.bf16.msra.mxu0 0
    %118 = vmatprep.subr.bf16.mxu0 0
    %119 = vmatpush1.bf16.msra.mxu0 0
    %120 = vmatprep.subr.bf16.mxu0 0
    %121 = vmatpush1.bf16.msra.mxu0 0
    %122 = vmatprep.subr.bf16.mxu0 0
    %123 = vmatpush1.bf16.msra.mxu0 0
    %124 = vmatprep.subr.bf16.mxu0 0
    %125 = vmatpush1.bf16.msra.mxu0 0
    %126 = vmatprep.subr.bf16.mxu0 0
    %127 = vmatpush1.bf16.msra.mxu0 0
    %128 = vmatprep.subr.bf16.mxu0 0
    %129 = vmatpush1.bf16.msra.mxu0 0
    %130 = vmatprep.subr.bf16.mxu0 0
    %131 = vmatpush1.bf16.msra.mxu0 0
    %132 = vmatprep.subr.bf16.mxu0 0
    %133 = vmatpush1.bf16.msra.mxu0 0
    %134 = vmatprep.subr.bf16.mxu0 0
    %135 = vmatpush1.bf16.msra.mxu0 0
    %136 = vmatprep.subr.bf16.mxu0 0
    %137 = vmatpush1.bf16.msra.mxu0 0
    %138 = vmatprep.subr.bf16.mxu0 0
    %139 = vmatpush1.bf16.msra.mxu0 0
    %140 = vmatprep.mubr.bf16.mxu0 0
    %141 = vmatmul.mubr.bf16.gmra.mrb[0].mxu0 %v106
    %v142 = vpop.f32.mrb[0].mxu0
    %v143 = vadd.f32 %v92, %v142
    %v144 = vpop.f32.mrb[0].mxu0
    %v145 = vpop.f32.mrb[0].mxu0
    %v146 = vadd.f32 %v92, %v145
    %v147 = vpop.f32.mrb[0].mxu0
    %148 = vdwg.mxu0
    %151 = vrot.lane.b32.xlu0 %v143, 96
    %v152 = vpop.permute.xlu0 %151
    %153 = vrot.lane.b32.xlu0 %v146, 96
    %v154 = vpop.permute.xlu0 %153
    %vm155 = vcmask 64512
    %v156 = vsel %vm155, %v143, 0
    %v158 = vsel %vm155, %v146, 0
    %v160 = vsel %vm155, %v152, 0
    %v162 = vsel %vm155, %v154, 0
    %164 = vmatprep.subr.mxu0 0.0
    %165 = vmatpush1.xpose.msra.mxu0 %v160
    %166 = vmatprep.subr.mxu0 0.0
    %167 = vmatpush1.xpose.msra.mxu0 %v162
    %168 = vmatprep.subr.mxu0 0.0
    %169 = vmatpush1.xpose.msra.mxu0 0.0
    %170 = vmatprep.subr.mxu0 0.0
    %171 = vmatpush1.xpose.msra.mxu0 0.0
    %172 = vmatprep.subr.mxu0 0.0
    %173 = vmatpush1.xpose.msra.mxu0 0.0
    %174 = vmatprep.subr.mxu0 0.0
    %175 = vmatpush1.xpose.msra.mxu0 0.0
    %176 = vmatprep.subr.mxu0 0.0
    %177 = vmatpush1.xpose.msra.mxu0 0.0
    %178 = vmatprep.subr.mxu0 0.0
    %179 = vmatpush1.xpose.msra.mxu0 0.0
    %180 = vmatprep.subr.mxu0 0.0
    %181 = vmatpush1.xpose.msra.mxu0 0.0
    %182 = vmatprep.subr.mxu0 0.0
    %183 = vmatpush1.xpose.msra.mxu0 0.0
    %184 = vmatprep.subr.mxu0 0.0
    %185 = vmatpush1.xpose.msra.mxu0 0.0
    %186 = vmatprep.subr.mxu0 0.0
    %187 = vmatpush1.xpose.msra.mxu0 0.0
    %188 = vmatprep.subr.mxu0 0.0
    %189 = vmatpush1.xpose.msra.mxu0 0.0
    %190 = vmatprep.subr.mxu0 0.0
    %191 = vmatpush1.xpose.msra.mxu0 0.0
    %192 = vmatprep.subr.mxu0 0.0
    %193 = vmatpush1.xpose.msra.mxu0 0.0
    %194 = vmatprep.subr.mxu0 0.0
    %195 = vmatpush1.xpose.msra.mxu0 0.0
    %196 = vmatprep.subr.mxu0 0.0
    %197 = vmatpush1.xpose.msra.mxu0 0.0
    %198 = vmatprep.subr.mxu0 0.0
    %199 = vmatpush1.xpose.msra.mxu0 0.0
    %200 = vmatprep.subr.mxu0 0.0
    %201 = vmatpush1.xpose.msra.mxu0 0.0
    %202 = vmatprep.subr.mxu0 0.0
    %203 = vmatpush1.xpose.msra.mxu0 0.0
    %204 = vmatprep.subr.mxu0 0.0
    %205 = vmatpush1.xpose.msra.mxu0 0.0
    %206 = vmatprep.subr.mxu0 0.0
    %207 = vmatpush1.xpose.msra.mxu0 0.0
    %208 = vmatprep.subr.mxu0 0.0
    %209 = vmatpush1.xpose.msra.mxu0 0.0
    %210 = vmatprep.subr.mxu0 0.0
    %211 = vmatpush1.xpose.msra.mxu0 0.0
    %212 = vmatprep.subr.mxu0 0.0
    %213 = vmatpush1.xpose.msra.mxu0 0.0
    %214 = vmatprep.subr.mxu0 0.0
    %215 = vmatpush1.xpose.msra.mxu0 0.0
    %216 = vmatprep.subr.mxu0 0.0
    %217 = vmatpush1.xpose.msra.mxu0 0.0
    %218 = vmatprep.subr.mxu0 0.0
    %219 = vmatpush1.xpose.msra.mxu0 0.0
    %220 = vmatprep.subr.mxu0 0.0
    %221 = vmatpush1.xpose.msra.mxu0 0.0
    %222 = vmatprep.subr.mxu0 0.0
    %223 = vmatpush1.xpose.msra.mxu0 0.0
    %224 = vmatprep.subr.mxu0 0.0
    %225 = vmatpush1.xpose.msra.mxu0 0.0
    %226 = vmatprep.subr.mxu0 0.0
    %227 = vmatpush1.xpose.msra.mxu0 0.0
    %228 = vmatprep.mubr.f32.mxu0 0.0
    %229 = vmatmul.mubr.f32.gmra.mrb[0].mxu0 %v156
    %v230 = vpop.f32.mrb[0].mxu0
    %v231 = vadd.f32 0.0, %v230
    %v232 = vpop.f32.mrb[0].mxu0
    %233 = vmatprep.mubr.f32.mxu0 0.0
    %234 = vmatmul.mubr.f32.gmra.mrb[0].mxu0 %v158
    %v235 = vpop.f32.mrb[0].mxu0
    %v236 = vadd.f32 0.0, %v235
    %v237 = vpop.f32.mrb[0].mxu0
    %238 = vdwg.mxu0
    %v239 = vmul.f32 %v231, 0.35355338
    %v240 = vmul.f32 %v236, 0.35355338
    %v241 = vadd.f32 %v239, %v35
    %v242 = vadd.f32 %v240, %v36
    %vm243 = vcmask 130048
    %v244 = vsel %vm243, %v241, -inf
    %245 = vmax.xlane.f32.xlu0 %v244
    %v246 = vpop.xlane.xlu0 %245
    %v247 = vsel %vm243, %v242, -inf
    %248 = vmax.xlane.f32.xlu0 %v247
    %v249 = vpop.xlane.xlu0 %248
    %v250 = vsub.f32 %v241, %v246
    %v251 = vsub.f32 %v242, %v249
    %v252 = vmul.f32 %v250, 1.442695
    %v253 = vpow.pop %v252
    %v254 = vmul.f32 %v251, 1.442695
    %v255 = vpow.pop %v254
    %v256 = vsel %vm243, %v253, 0.0
    %257 = vadd.xlane.f32.xlu0 %v256
    %v258 = vpop.xlane.xlu0 %257
    %v259 = vsel %vm243, %v255, 0.0
    %260 = vadd.xlane.f32.xlu0 %v259
    %v261 = vpop.xlane.xlu0 %260
    %v262 = vrcp.pop %v258
    %v263 = vrcp.pop %v261
    %v264 = vmul.f32 %v253, %v262
    %v265 = vmul.f32 %v255, %v263
    %266 = vrot.lane.b32.xlu0 %v143, 64
    %v267 = vpop.permute.xlu0 %266
    %268 = vrot.lane.b32.xlu0 %v146, 64
    %v269 = vpop.permute.xlu0 %268
    %v273 = vsel %vm243, %v264, 0
    %v276 = vsel %vm243, %v265, 0
    %278 = vmatprep.subr.mxu0 0.0
    %279 = vmatpush1.msra.mxu0 %v267
    %280 = vmatprep.subr.mxu0 0.0
    %281 = vmatpush1.msra.mxu0 %v269
    %282 = vmatprep.subr.mxu0 0.0
    %283 = vmatpush1.msra.mxu0 0.0
    %284 = vmatprep.subr.mxu0 0.0
    %285 = vmatpush1.msra.mxu0 0.0
    %286 = vmatprep.subr.mxu0 0.0
    %287 = vmatpush1.msra.mxu0 0.0
    %288 = vmatprep.subr.mxu0 0.0
    %289 = vmatpush1.msra.mxu0 0.0
    %290 = vmatprep.subr.mxu0 0.0
    %291 = vmatpush1.msra.mxu0 0.0
    %292 = vmatprep.subr.mxu0 0.0
    %293 = vmatpush1.msra.mxu0 0.0
    %294 = vmatprep.subr.mxu0 0.0
    %295 = vmatpush1.msra.mxu0 0.0
    %296 = vmatprep.subr.mxu0 0.0
    %297 = vmatpush1.msra.mxu0 0.0
    %298 = vmatprep.subr.mxu0 0.0
    %299 = vmatpush1.msra.mxu0 0.0
    %300 = vmatprep.subr.mxu0 0.0
    %301 = vmatpush1.msra.mxu0 0.0
    %302 = vmatprep.subr.mxu0 0.0
    %303 = vmatpush1.msra.mxu0 0.0
    %304 = vmatprep.subr.mxu0 0.0
    %305 = vmatpush1.msra.mxu0 0.0
    %306 = vmatprep.subr.mxu0 0.0
    %307 = vmatpush1.msra.mxu0 0.0
    %308 = vmatprep.subr.mxu0 0.0
    %309 = vmatpush1.msra.mxu0 0.0
    %310 = vmatprep.subr.mxu0 0.0
    %311 = vmatpush1.msra.mxu0 0.0
    %312 = vmatprep.subr.mxu0 0.0
    %313 = vmatpush1.msra.mxu0 0.0
    %314 = vmatprep.subr.mxu0 0.0
    %315 = vmatpush1.msra.mxu0 0.0
    %316 = vmatprep.subr.mxu0 0.0
    %317 = vmatpush1.msra.mxu0 0.0
    %318 = vmatprep.subr.mxu0 0.0
    %319 = vmatpush1.msra.mxu0 0.0
    %320 = vmatprep.subr.mxu0 0.0
    %321 = vmatpush1.msra.mxu0 0.0
    %322 = vmatprep.subr.mxu0 0.0
    %323 = vmatpush1.msra.mxu0 0.0
    %324 = vmatprep.subr.mxu0 0.0
    %325 = vmatpush1.msra.mxu0 0.0
    %326 = vmatprep.subr.mxu0 0.0
    %327 = vmatpush1.msra.mxu0 0.0
    %328 = vmatprep.subr.mxu0 0.0
    %329 = vmatpush1.msra.mxu0 0.0
    %330 = vmatprep.subr.mxu0 0.0
    %331 = vmatpush1.msra.mxu0 0.0
    %332 = vmatprep.subr.mxu0 0.0
    %333 = vmatpush1.msra.mxu0 0.0
    %334 = vmatprep.subr.mxu0 0.0
    %335 = vmatpush1.msra.mxu0 0.0
    %336 = vmatprep.subr.mxu0 0.0
    %337 = vmatpush1.msra.mxu0 0.0
    %338 = vmatprep.subr.mxu0 0.0
    %339 = vmatpush1.msra.mxu0 0.0
    %340 = vmatprep.subr.mxu0 0.0
    %341 = vmatpush1.msra.mxu0 0.0
    %342 = vmatprep.mubr.f32.mxu0 0.0
    %343 = vmatmul.mubr.f32.gmra.mrb[0].mxu0 %v273
    %v344 = vpop.f32.mrb[0].mxu0
    %v345 = vadd.f32 0.0, %v344
    %v346 = vpop.f32.mrb[0].mxu0
    %347 = vmatprep.mubr.f32.mxu0 0.0
    %348 = vmatmul.mubr.f32.gmra.mrb[0].mxu0 %v276
    %v349 = vpop.f32.mrb[0].mxu0
    %v350 = vadd.f32 0.0, %v349
    %v351 = vpop.f32.mrb[0].mxu0
    %352 = vdwg.mxu0
    %353 = vrot.lane.b32.xlu0 %v143, 120
    %v354 = vpop.permute.xlu0 %353
    %355 = vrot.lane.b32.xlu0 %v146, 120
    %v356 = vpop.permute.xlu0 %355
    %357 = vrot.lane.b32.xlu0 %v143, 88
    %v358 = vpop.permute.xlu0 %357
    %359 = vrot.lane.b32.xlu0 %v146, 88
    %v360 = vpop.permute.xlu0 %359
    %v361 = vsel %vm155, %v354, 0
    %v363 = vsel %vm155, %v356, 0
    %v365 = vsel %vm155, %v358, 0
    %v367 = vsel %vm155, %v360, 0
    %369 = vmatprep.subr.mxu0 0.0
    %370 = vmatpush1.xpose.msra.mxu0 %v365
    %371 = vmatprep.subr.mxu0 0.0
    %372 = vmatpush1.xpose.msra.mxu0 %v367
    %373 = vmatprep.subr.mxu0 0.0
    %374 = vmatpush1.xpose.msra.mxu0 0.0
    %375 = vmatprep.subr.mxu0 0.0
    %376 = vmatpush1.xpose.msra.mxu0 0.0
    %377 = vmatprep.subr.mxu0 0.0
    %378 = vmatpush1.xpose.msra.mxu0 0.0
    %379 = vmatprep.subr.mxu0 0.0
    %380 = vmatpush1.xpose.msra.mxu0 0.0
    %381 = vmatprep.subr.mxu0 0.0
    %382 = vmatpush1.xpose.msra.mxu0 0.0
    %383 = vmatprep.subr.mxu0 0.0
    %384 = vmatpush1.xpose.msra.mxu0 0.0
    %385 = vmatprep.subr.mxu0 0.0
    %386 = vmatpush1.xpose.msra.mxu0 0.0
    %387 = vmatprep.subr.mxu0 0.0
    %388 = vmatpush1.xpose.msra.mxu0 0.0
    %389 = vmatprep.subr.mxu0 0.0
    %390 = vmatpush1.xpose.msra.mxu0 0.0
    %391 = vmatprep.subr.mxu0 0.0
    %392 = vmatpush1.xpose.msra.mxu0 0.0
    %393 = vmatprep.subr.mxu0 0.0
    %394 = vmatpush1.xpose.msra.mxu0 0.0
    %395 = vmatprep.subr.mxu0 0.0
    %396 = vmatpush1.xpose.msra.mxu0 0.0
    %397 = vmatprep.subr.mxu0 0.0
    %398 = vmatpush1.xpose.msra.mxu0 0.0
    %399 = vmatprep.subr.mxu0 0.0
    %400 = vmatpush1.xpose.msra.mxu0 0.0
    %401 = vmatprep.subr.mxu0 0.0
    %402 = vmatpush1.xpose.msra.mxu0 0.0
    %403 = vmatprep.subr.mxu0 0.0
    %404 = vmatpush1.xpose.msra.mxu0 0.0
    %405 = vmatprep.subr.mxu0 0.0
    %406 = vmatpush1.xpose.msra.mxu0 0.0
    %407 = vmatprep.subr.mxu0 0.0
    %408 = vmatpush1.xpose.msra.mxu0 0.0
    %409 = vmatprep.subr.mxu0 0.0
    %410 = vmatpush1.xpose.msra.mxu0 0.0
    %411 = vmatprep.subr.mxu0 0.0
    %412 = vmatpush1.xpose.msra.mxu0 0.0
    %413 = vmatprep.subr.mxu0 0.0
    %414 = vmatpush1.xpose.msra.mxu0 0.0
    %415 = vmatprep.subr.mxu0 0.0
    %416 = vmatpush1.xpose.msra.mxu0 0.0
    %417 = vmatprep.subr.mxu0 0.0
    %418 = vmatpush1.xpose.msra.mxu0 0.0
    %419 = vmatprep.subr.mxu0 0.0
    %420 = vmatpush1.xpose.msra.mxu0 0.0
    %421 = vmatprep.subr.mxu0 0.0
    %422 = vmatpush1.xpose.msra.mxu0 0.0
    %423 = vmatprep.subr.mxu0 0.0
    %424 = vmatpush1.xpose.msra.mxu0 0.0
    %425 = vmatprep.subr.mxu0 0.0
    %426 = vmatpush1.xpose.msra.mxu0 0.0
    %427 = vmatprep.subr.mxu0 0.0
    %428 = vmatpush1.xpose.msra.mxu0 0.0
    %429 = vmatprep.subr.mxu0 0.0
    %430 = vmatpush1.xpose.msra.mxu0 0.0
    %431 = vmatprep.subr.mxu0 0.0
    %432 = vmatpush1.xpose.msra.mxu0 0.0
    %433 = vmatprep.mubr.f32.mxu0 0.0
    %434 = vmatmul.mubr.f32.gmra.mrb[0].mxu0 %v361
    %v435 = vpop.f32.mrb[0].mxu0
    %v436 = vadd.f32 0.0, %v435
    %v437 = vpop.f32.mrb[0].mxu0
    %438 = vmatprep.mubr.f32.mxu0 0.0
    %439 = vmatmul.mubr.f32.gmra.mrb[0].mxu0 %v363
    %v440 = vpop.f32.mrb[0].mxu0
    %v441 = vadd.f32 0.0, %v440
    %v442 = vpop.f32.mrb[0].mxu0
    %443 = vdwg.mxu0
    %v444 = vmul.f32 %v436, 0.35355338
    %v445 = vmul.f32 %v441, 0.35355338
    %v446 = vadd.f32 %v444, %v35
    %v447 = vadd.f32 %v445, %v36
    %v448 = vsel %vm243, %v446, -inf
    %449 = vmax.xlane.f32.xlu0 %v448
    %v450 = vpop.xlane.xlu0 %449
    %v451 = vsel %vm243, %v447, -inf
    %452 = vmax.xlane.f32.xlu0 %v451
    %v453 = vpop.xlane.xlu0 %452
    %v454 = vsub.f32 %v446, %v450
    %v455 = vsub.f32 %v447, %v453
    %v456 = vmul.f32 %v454, 1.442695
    %v457 = vpow.pop %v456
    %v458 = vmul.f32 %v455, 1.442695
    %v459 = vpow.pop %v458
    %v460 = vsel %vm243, %v457, 0.0
    %461 = vadd.xlane.f32.xlu0 %v460
    %v462 = vpop.xlane.xlu0 %461
    %v463 = vsel %vm243, %v459, 0.0
    %464 = vadd.xlane.f32.xlu0 %v463
    %v465 = vpop.xlane.xlu0 %464
    %v466 = vrcp.pop %v462
    %v467 = vrcp.pop %v465
    %v468 = vmul.f32 %v457, %v466
    %v469 = vmul.f32 %v459, %v467
    %470 = vrot.lane.b32.xlu0 %v143, 56
    %v471 = vpop.permute.xlu0 %470
    %472 = vrot.lane.b32.xlu0 %v146, 56
    %v473 = vpop.permute.xlu0 %472
    %v477 = vsel %vm243, %v468, 0
    %v480 = vsel %vm243, %v469, 0
    %482 = vmatprep.subr.mxu0 0.0
    %483 = vmatpush1.msra.mxu0 %v471
    %484 = vmatprep.subr.mxu0 0.0
    %485 = vmatpush1.msra.mxu0 %v473
    %486 = vmatprep.subr.mxu0 0.0
    %487 = vmatpush1.msra.mxu0 0.0
    %488 = vmatprep.subr.mxu0 0.0
    %489 = vmatpush1.msra.mxu0 0.0
    %490 = vmatprep.subr.mxu0 0.0
    %491 = vmatpush1.msra.mxu0 0.0
    %492 = vmatprep.subr.mxu0 0.0
    %493 = vmatpush1.msra.mxu0 0.0
    %494 = vmatprep.subr.mxu0 0.0
    %495 = vmatpush1.msra.mxu0 0.0
    %496 = vmatprep.subr.mxu0 0.0
    %497 = vmatpush1.msra.mxu0 0.0
    %498 = vmatprep.subr.mxu0 0.0
    %499 = vmatpush1.msra.mxu0 0.0
    %500 = vmatprep.subr.mxu0 0.0
    %501 = vmatpush1.msra.mxu0 0.0
    %502 = vmatprep.subr.mxu0 0.0
    %503 = vmatpush1.msra.mxu0 0.0
    %504 = vmatprep.subr.mxu0 0.0
    %505 = vmatpush1.msra.mxu0 0.0
    %506 = vmatprep.subr.mxu0 0.0
    %507 = vmatpush1.msra.mxu0 0.0
    %508 = vmatprep.subr.mxu0 0.0
    %509 = vmatpush1.msra.mxu0 0.0
    %510 = vmatprep.subr.mxu0 0.0
    %511 = vmatpush1.msra.mxu0 0.0
    %512 = vmatprep.subr.mxu0 0.0
    %513 = vmatpush1.msra.mxu0 0.0
    %514 = vmatprep.subr.mxu0 0.0
    %515 = vmatpush1.msra.mxu0 0.0
    %516 = vmatprep.subr.mxu0 0.0
    %517 = vmatpush1.msra.mxu0 0.0
    %518 = vmatprep.subr.mxu0 0.0
    %519 = vmatpush1.msra.mxu0 0.0
    %520 = vmatprep.subr.mxu0 0.0
    %521 = vmatpush1.msra.mxu0 0.0
    %522 = vmatprep.subr.mxu0 0.0
    %523 = vmatpush1.msra.mxu0 0.0
    %524 = vmatprep.subr.mxu0 0.0
    %525 = vmatpush1.msra.mxu0 0.0
    %526 = vmatprep.subr.mxu0 0.0
    %527 = vmatpush1.msra.mxu0 0.0
    %528 = vmatprep.subr.mxu0 0.0
    %529 = vmatpush1.msra.mxu0 0.0
    %530 = vmatprep.subr.mxu0 0.0
    %531 = vmatpush1.msra.mxu0 0.0
    %532 = vmatprep.subr.mxu0 0.0
    %533 = vmatpush1.msra.mxu0 0.0
    %534 = vmatprep.subr.mxu0 0.0
    %535 = vmatpush1.msra.mxu0 0.0
    %536 = vmatprep.subr.mxu0 0.0
    %537 = vmatpush1.msra.mxu0 0.0
    %538 = vmatprep.subr.mxu0 0.0
    %539 = vmatpush1.msra.mxu0 0.0
    %540 = vmatprep.subr.mxu0 0.0
    %541 = vmatpush1.msra.mxu0 0.0
    %542 = vmatprep.subr.mxu0 0.0
    %543 = vmatpush1.msra.mxu0 0.0
    %544 = vmatprep.subr.mxu0 0.0
    %545 = vmatpush1.msra.mxu0 0.0
    %546 = vmatprep.mubr.f32.mxu0 0.0
    %547 = vmatmul.mubr.f32.gmra.mrb[0].mxu0 %v477
    %v548 = vpop.f32.mrb[0].mxu0
    %v549 = vadd.f32 0.0, %v548
    %v550 = vpop.f32.mrb[0].mxu0
    %551 = vmatprep.mubr.f32.mxu0 0.0
    %552 = vmatmul.mubr.f32.gmra.mrb[0].mxu0 %v480
    %v553 = vpop.f32.mrb[0].mxu0
    %v554 = vadd.f32 0.0, %v553
    %v555 = vpop.f32.mrb[0].mxu0
    %556 = vdwg.mxu0
    %557 = vrot.lane.b32.xlu0 %v143, 112
    %v558 = vpop.permute.xlu0 %557
    %559 = vrot.lane.b32.xlu0 %v146, 112
    %v560 = vpop.permute.xlu0 %559
    %561 = vrot.lane.b32.xlu0 %v143, 80
    %v562 = vpop.permute.xlu0 %561
    %563 = vrot.lane.b32.xlu0 %v146, 80
    %v564 = vpop.permute.xlu0 %563
    %v565 = vsel %vm155, %v558, 0
    %v567 = vsel %vm155, %v560, 0
    %v569 = vsel %vm155, %v562, 0
    %v571 = vsel %vm155, %v564, 0
    %573 = vmatprep.subr.mxu0 0.0
    %574 = vmatpush1.xpose.msra.mxu0 %v569
    %575 = vmatprep.subr.mxu0 0.0
    %576 = vmatpush1.xpose.msra.mxu0 %v571
    %577 = vmatprep.subr.mxu0 0.0
    %578 = vmatpush1.xpose.msra.mxu0 0.0
    %579 = vmatprep.subr.mxu0 0.0
    %580 = vmatpush1.xpose.msra.mxu0 0.0
    %581 = vmatprep.subr.mxu0 0.0
    %582 = vmatpush1.xpose.msra.mxu0 0.0
    %583 = vmatprep.subr.mxu0 0.0
    %584 = vmatpush1.xpose.msra.mxu0 0.0
    %585 = vmatprep.subr.mxu0 0.0
    %586 = vmatpush1.xpose.msra.mxu0 0.0
    %587 = vmatprep.subr.mxu0 0.0
    %588 = vmatpush1.xpose.msra.mxu0 0.0
    %589 = vmatprep.subr.mxu0 0.0
    %590 = vmatpush1.xpose.msra.mxu0 0.0
    %591 = vmatprep.subr.mxu0 0.0
    %592 = vmatpush1.xpose.msra.mxu0 0.0
    %593 = vmatprep.subr.mxu0 0.0
    %594 = vmatpush1.xpose.msra.mxu0 0.0
    %595 = vmatprep.subr.mxu0 0.0
    %596 = vmatpush1.xpose.msra.mxu0 0.0
    %597 = vmatprep.subr.mxu0 0.0
    %598 = vmatpush1.xpose.msra.mxu0 0.0
    %599 = vmatprep.subr.mxu0 0.0
    %600 = vmatpush1.xpose.msra.mxu0 0.0
    %601 = vmatprep.subr.mxu0 0.0
    %602 = vmatpush1.xpose.msra.mxu0 0.0
    %603 = vmatprep.subr.mxu0 0.0
    %604 = vmatpush1.xpose.msra.mxu0 0.0
    %605 = vmatprep.subr.mxu0 0.0
    %606 = vmatpush1.xpose.msra.mxu0 0.0
    %607 = vmatprep.subr.mxu0 0.0
    %608 = vmatpush1.xpose.msra.mxu0 0.0
    %609 = vmatprep.subr.mxu0 0.0
    %610 = vmatpush1.xpose.msra.mxu0 0.0
    %611 = vmatprep.subr.mxu0 0.0
    %612 = vmatpush1.xpose.msra.mxu0 0.0
    %613 = vmatprep.subr.mxu0 0.0
    %614 = vmatpush1.xpose.msra.mxu0 0.0
    %615 = vmatprep.subr.mxu0 0.0
    %616 = vmatpush1.xpose.msra.mxu0 0.0
    %617 = vmatprep.subr.mxu0 0.0
    %618 = vmatpush1.xpose.msra.mxu0 0.0
    %619 = vmatprep.subr.mxu0 0.0
    %620 = vmatpush1.xpose.msra.mxu0 0.0
    %621 = vmatprep.subr.mxu0 0.0
    %622 = vmatpush1.xpose.msra.mxu0 0.0
    %623 = vmatprep.subr.mxu0 0.0
    %624 = vmatpush1.xpose.msra.mxu0 0.0
    %625 = vmatprep.subr.mxu0 0.0
    %626 = vmatpush1.xpose.msra.mxu0 0.0
    %627 = vmatprep.subr.mxu0 0.0
    %628 = vmatpush1.xpose.msra.mxu0 0.0
    %629 = vmatprep.subr.mxu0 0.0
    %630 = vmatpush1.xpose.msra.mxu0 0.0
    %631 = vmatprep.subr.mxu0 0.0
    %632 = vmatpush1.xpose.msra.mxu0 0.0
    %633 = vmatprep.subr.mxu0 0.0
    %634 = vmatpush1.xpose.msra.mxu0 0.0
    %635 = vmatprep.subr.mxu0 0.0
    %636 = vmatpush1.xpose.msra.mxu0 0.0
    %637 = vmatprep.mubr.f32.mxu0 0.0
    %638 = vmatmul.mubr.f32.gmra.mrb[0].mxu0 %v565
    %v639 = vpop.f32.mrb[0].mxu0
    %v640 = vadd.f32 0.0, %v639
    %v641 = vpop.f32.mrb[0].mxu0
    %642 = vmatprep.mubr.f32.mxu0 0.0
    %643 = vmatmul.mubr.f32.gmra.mrb[0].mxu0 %v567
    %v644 = vpop.f32.mrb[0].mxu0
    %v645 = vadd.f32 0.0, %v644
    %v646 = vpop.f32.mrb[0].mxu0
    %647 = vdwg.mxu0
    %v648 = vmul.f32 %v640, 0.35355338
    %v649 = vmul.f32 %v645, 0.35355338
    %v650 = vadd.f32 %v648, %v35
    %v651 = vadd.f32 %v649, %v36
    %v652 = vsel %vm243, %v650, -inf
    %653 = vmax.xlane.f32.xlu0 %v652
    %v654 = vpop.xlane.xlu0 %653
    %v655 = vsel %vm243, %v651, -inf
    %656 = vmax.xlane.f32.xlu0 %v655
    %v657 = vpop.xlane.xlu0 %656
    %v658 = vsub.f32 %v650, %v654
    %v659 = vsub.f32 %v651, %v657
    %v660 = vmul.f32 %v658, 1.442695
    %v661 = vpow.pop %v660
    %v662 = vmul.f32 %v659, 1.442695
    %v663 = vpow.pop %v662
    %v664 = vsel %vm243, %v661, 0.0
    %665 = vadd.xlane.f32.xlu0 %v664
    %v666 = vpop.xlane.xlu0 %665
    %v667 = vsel %vm243, %v663, 0.0
    %668 = vadd.xlane.f32.xlu0 %v667
    %v669 = vpop.xlane.xlu0 %668
    %v670 = vrcp.pop %v666
    %v671 = vrcp.pop %v669
    %v672 = vmul.f32 %v661, %v670
    %v673 = vmul.f32 %v663, %v671
    %674 = vrot.lane.b32.xlu0 %v143, 48
    %v675 = vpop.permute.xlu0 %674
    %676 = vrot.lane.b32.xlu0 %v146, 48
    %v677 = vpop.permute.xlu0 %676
    %v681 = vsel %vm243, %v672, 0
    %v684 = vsel %vm243, %v673, 0
    %686 = vmatprep.subr.mxu0 0.0
    %687 = vmatpush1.msra.mxu0 %v675
    %688 = vmatprep.subr.mxu0 0.0
    %689 = vmatpush1.msra.mxu0 %v677
    %690 = vmatprep.subr.mxu0 0.0
    %691 = vmatpush1.msra.mxu0 0.0
    %692 = vmatprep.subr.mxu0 0.0
    %693 = vmatpush1.msra.mxu0 0.0
    %694 = vmatprep.subr.mxu0 0.0
    %695 = vmatpush1.msra.mxu0 0.0
    %696 = vmatprep.subr.mxu0 0.0
    %697 = vmatpush1.msra.mxu0 0.0
    %698 = vmatprep.subr.mxu0 0.0
    %699 = vmatpush1.msra.mxu0 0.0
    %700 = vmatprep.subr.mxu0 0.0
    %701 = vmatpush1.msra.mxu0 0.0
    %702 = vmatprep.subr.mxu0 0.0
    %703 = vmatpush1.msra.mxu0 0.0
    %704 = vmatprep.subr.mxu0 0.0
    %705 = vmatpush1.msra.mxu0 0.0
    %706 = vmatprep.subr.mxu0 0.0
    %707 = vmatpush1.msra.mxu0 0.0
    %708 = vmatprep.subr.mxu0 0.0
    %709 = vmatpush1.msra.mxu0 0.0
    %710 = vmatprep.subr.mxu0 0.0
    %711 = vmatpush1.msra.mxu0 0.0
    %712 = vmatprep.subr.mxu0 0.0
    %713 = vmatpush1.msra.mxu0 0.0
    %714 = vmatprep.subr.mxu0 0.0
    %715 = vmatpush1.msra.mxu0 0.0
    %716 = vmatprep.subr.mxu0 0.0
    %717 = vmatpush1.msra.mxu0 0.0
    %718 = vmatprep.subr.mxu0 0.0
    %719 = vmatpush1.msra.mxu0 0.0
    %720 = vmatprep.subr.mxu0 0.0
    %721 = vmatpush1.msra.mxu0 0.0
    %722 = vmatprep.subr.mxu0 0.0
    %723 = vmatpush1.msra.mxu0 0.0
    %724 = vmatprep.subr.mxu0 0.0
    %725 = vmatpush1.msra.mxu0 0.0
    %726 = vmatprep.subr.mxu0 0.0
    %727 = vmatpush1.msra.mxu0 0.0
    %728 = vmatprep.subr.mxu0 0.0
    %729 = vmatpush1.msra.mxu0 0.0
    %730 = vmatprep.subr.mxu0 0.0
    %731 = vmatpush1.msra.mxu0 0.0
    %732 = vmatprep.subr.mxu0 0.0
    %733 = vmatpush1.msra.mxu0 0.0
    %734 = vmatprep.subr.mxu0 0.0
    %735 = vmatpush1.msra.mxu0 0.0
    %736 = vmatprep.subr.mxu0 0.0
    %737 = vmatpush1.msra.mxu0 0.0
    %738 = vmatprep.subr.mxu0 0.0
    %739 = vmatpush1.msra.mxu0 0.0
    %740 = vmatprep.subr.mxu0 0.0
    %741 = vmatpush1.msra.mxu0 0.0
    %742 = vmatprep.subr.mxu0 0.0
    %743 = vmatpush1.msra.mxu0 0.0
    %744 = vmatprep.subr.mxu0 0.0
    %745 = vmatpush1.msra.mxu0 0.0
    %746 = vmatprep.subr.mxu0 0.0
    %747 = vmatpush1.msra.mxu0 0.0
    %748 = vmatprep.subr.mxu0 0.0
    %749 = vmatpush1.msra.mxu0 0.0
    %750 = vmatprep.mubr.f32.mxu0 0.0
    %751 = vmatmul.mubr.f32.gmra.mrb[0].mxu0 %v681
    %v752 = vpop.f32.mrb[0].mxu0
    %v753 = vadd.f32 0.0, %v752
    %v754 = vpop.f32.mrb[0].mxu0
    %755 = vmatprep.mubr.f32.mxu0 0.0
    %756 = vmatmul.mubr.f32.gmra.mrb[0].mxu0 %v684
    %v757 = vpop.f32.mrb[0].mxu0
    %v758 = vadd.f32 0.0, %v757
    %v759 = vpop.f32.mrb[0].mxu0
    %760 = vdwg.mxu0
    %761 = vrot.lane.b32.xlu0 %v143, 104
    %v762 = vpop.permute.xlu0 %761
    %763 = vrot.lane.b32.xlu0 %v146, 104
    %v764 = vpop.permute.xlu0 %763
    %765 = vrot.lane.b32.xlu0 %v143, 72
    %v766 = vpop.permute.xlu0 %765
    %767 = vrot.lane.b32.xlu0 %v146, 72
    %v768 = vpop.permute.xlu0 %767
    %v769 = vsel %vm155, %v762, 0
    %v771 = vsel %vm155, %v764, 0
    %v773 = vsel %vm155, %v766, 0
    %v775 = vsel %vm155, %v768, 0
    %777 = vmatprep.subr.mxu0 0.0
    %778 = vmatpush1.xpose.msra.mxu0 %v773
    %779 = vmatprep.subr.mxu0 0.0
    %780 = vmatpush1.xpose.msra.mxu0 %v775
    %781 = vmatprep.subr.mxu0 0.0
    %782 = vmatpush1.xpose.msra.mxu0 0.0
    %783 = vmatprep.subr.mxu0 0.0
    %784 = vmatpush1.xpose.msra.mxu0 0.0
    %785 = vmatprep.subr.mxu0 0.0
    %786 = vmatpush1.xpose.msra.mxu0 0.0
    %787 = vmatprep.subr.mxu0 0.0
    %788 = vmatpush1.xpose.msra.mxu0 0.0
    %789 = vmatprep.subr.mxu0 0.0
    %790 = vmatpush1.xpose.msra.mxu0 0.0
    %791 = vmatprep.subr.mxu0 0.0
    %792 = vmatpush1.xpose.msra.mxu0 0.0
    %793 = vmatprep.subr.mxu0 0.0
    %794 = vmatpush1.xpose.msra.mxu0 0.0
    %795 = vmatprep.subr.mxu0 0.0
    %796 = vmatpush1.xpose.msra.mxu0 0.0
    %797 = vmatprep.subr.mxu0 0.0
    %798 = vmatpush1.xpose.msra.mxu0 0.0
    %799 = vmatprep.subr.mxu0 0.0
    %800 = vmatpush1.xpose.msra.mxu0 0.0
    %801 = vmatprep.subr.mxu0 0.0
    %802 = vmatpush1.xpose.msra.mxu0 0.0
    %803 = vmatprep.subr.mxu0 0.0
    %804 = vmatpush1.xpose.msra.mxu0 0.0
    %805 = vmatprep.subr.mxu0 0.0
    %806 = vmatpush1.xpose.msra.mxu0 0.0
    %807 = vmatprep.subr.mxu0 0.0
    %808 = vmatpush1.xpose.msra.mxu0 0.0
    %809 = vmatprep.subr.mxu0 0.0
    %810 = vmatpush1.xpose.msra.mxu0 0.0
    %811 = vmatprep.subr.mxu0 0.0
    %812 = vmatpush1.xpose.msra.mxu0 0.0
    %813 = vmatprep.subr.mxu0 0.0
    %814 = vmatpush1.xpose.msra.mxu0 0.0
    %815 = vmatprep.subr.mxu0 0.0
    %816 = vmatpush1.xpose.msra.mxu0 0.0
    %817 = vmatprep.subr.mxu0 0.0
    %818 = vmatpush1.xpose.msra.mxu0 0.0
    %819 = vmatprep.subr.mxu0 0.0
    %820 = vmatpush1.xpose.msra.mxu0 0.0
    %821 = vmatprep.subr.mxu0 0.0
    %822 = vmatpush1.xpose.msra.mxu0 0.0
    %823 = vmatprep.subr.mxu0 0.0
    %824 = vmatpush1.xpose.msra.mxu0 0.0
    %825 = vmatprep.subr.mxu0 0.0
    %826 = vmatpush1.xpose.msra.mxu0 0.0
    %827 = vmatprep.subr.mxu0 0.0
    %828 = vmatpush1.xpose.msra.mxu0 0.0
    %829 = vmatprep.subr.mxu0 0.0
    %830 = vmatpush1.xpose.msra.mxu0 0.0
    %831 = vmatprep.subr.mxu0 0.0
    %832 = vmatpush1.xpose.msra.mxu0 0.0
    %833 = vmatprep.subr.mxu0 0.0
    %834 = vmatpush1.xpose.msra.mxu0 0.0
    %835 = vmatprep.subr.mxu0 0.0
    %836 = vmatpush1.xpose.msra.mxu0 0.0
    %837 = vmatprep.subr.mxu0 0.0
    %838 = vmatpush1.xpose.msra.mxu0 0.0
    %839 = vmatprep.subr.mxu0 0.0
    %840 = vmatpush1.xpose.msra.mxu0 0.0
    %841 = vmatprep.mubr.f32.mxu0 0.0
    %842 = vmatmul.mubr.f32.gmra.mrb[0].mxu0 %v769
    %v843 = vpop.f32.mrb[0].mxu0
    %v844 = vadd.f32 0.0, %v843
    %v845 = vpop.f32.mrb[0].mxu0
    %846 = vmatprep.mubr.f32.mxu0 0.0
    %847 = vmatmul.mubr.f32.gmra.mrb[0].mxu0 %v771
    %v848 = vpop.f32.mrb[0].mxu0
    %v849 = vadd.f32 0.0, %v848
    %v850 = vpop.f32.mrb[0].mxu0
    %851 = vdwg.mxu0
    %v852 = vmul.f32 %v844, 0.35355338
    %v853 = vmul.f32 %v849, 0.35355338
    %v854 = vadd.f32 %v852, %v35
    %v855 = vadd.f32 %v853, %v36
    %v856 = vsel %vm243, %v854, -inf
    %857 = vmax.xlane.f32.xlu0 %v856
    %v858 = vpop.xlane.xlu0 %857
    %v859 = vsel %vm243, %v855, -inf
    %860 = vmax.xlane.f32.xlu0 %v859
    %v861 = vpop.xlane.xlu0 %860
    %v862 = vsub.f32 %v854, %v858
    %v863 = vsub.f32 %v855, %v861
    %v864 = vmul.f32 %v862, 1.442695
    %v865 = vpow.pop %v864
    %v866 = vmul.f32 %v863, 1.442695
    %v867 = vpow.pop %v866
    %v868 = vsel %vm243, %v865, 0.0
    %869 = vadd.xlane.f32.xlu0 %v868
    %v870 = vpop.xlane.xlu0 %869
    %v871 = vsel %vm243, %v867, 0.0
    %872 = vadd.xlane.f32.xlu0 %v871
    %v873 = vpop.xlane.xlu0 %872
    %v874 = vrcp.pop %v870
    %v875 = vrcp.pop %v873
    %v876 = vmul.f32 %v865, %v874
    %v877 = vmul.f32 %v867, %v875
    %878 = vrot.lane.b32.xlu0 %v143, 40
    %v879 = vpop.permute.xlu0 %878
    %880 = vrot.lane.b32.xlu0 %v146, 40
    %v881 = vpop.permute.xlu0 %880
    %v885 = vsel %vm243, %v876, 0
    %v888 = vsel %vm243, %v877, 0
    %890 = vmatprep.subr.mxu0 0.0
    %891 = vmatpush1.msra.mxu0 %v879
    %892 = vmatprep.subr.mxu0 0.0
    %893 = vmatpush1.msra.mxu0 %v881
    %894 = vmatprep.subr.mxu0 0.0
    %895 = vmatpush1.msra.mxu0 0.0
    %896 = vmatprep.subr.mxu0 0.0
    %897 = vmatpush1.msra.mxu0 0.0
    %898 = vmatprep.subr.mxu0 0.0
    %899 = vmatpush1.msra.mxu0 0.0
    %900 = vmatprep.subr.mxu0 0.0
    %901 = vmatpush1.msra.mxu0 0.0
    %902 = vmatprep.subr.mxu0 0.0
    %903 = vmatpush1.msra.mxu0 0.0
    %904 = vmatprep.subr.mxu0 0.0
    %905 = vmatpush1.msra.mxu0 0.0
    %906 = vmatprep.subr.mxu0 0.0
    %907 = vmatpush1.msra.mxu0 0.0
    %908 = vmatprep.subr.mxu0 0.0
    %909 = vmatpush1.msra.mxu0 0.0
    %910 = vmatprep.subr.mxu0 0.0
    %911 = vmatpush1.msra.mxu0 0.0
    %912 = vmatprep.subr.mxu0 0.0
    %913 = vmatpush1.msra.mxu0 0.0
    %914 = vmatprep.subr.mxu0 0.0
    %915 = vmatpush1.msra.mxu0 0.0
    %916 = vmatprep.subr.mxu0 0.0
    %917 = vmatpush1.msra.mxu0 0.0
    %918 = vmatprep.subr.mxu0 0.0
    %919 = vmatpush1.msra.mxu0 0.0
    %920 = vmatprep.subr.mxu0 0.0
    %921 = vmatpush1.msra.mxu0 0.0
    %922 = vmatprep.subr.mxu0 0.0
    %923 = vmatpush1.msra.mxu0 0.0
    %924 = vmatprep.subr.mxu0 0.0
    %925 = vmatpush1.msra.mxu0 0.0
    %926 = vmatprep.subr.mxu0 0.0
    %927 = vmatpush1.msra.mxu0 0.0
    %928 = vmatprep.subr.mxu0 0.0
    %929 = vmatpush1.msra.mxu0 0.0
    %930 = vmatprep.subr.mxu0 0.0
    %931 = vmatpush1.msra.mxu0 0.0
    %932 = vmatprep.subr.mxu0 0.0
    %933 = vmatpush1.msra.mxu0 0.0
    %934 = vmatprep.subr.mxu0 0.0
    %935 = vmatpush1.msra.mxu0 0.0
    %936 = vmatprep.subr.mxu0 0.0
    %937 = vmatpush1.msra.mxu0 0.0
    %938 = vmatprep.subr.mxu0 0.0
    %939 = vmatpush1.msra.mxu0 0.0
    %940 = vmatprep.subr.mxu0 0.0
    %941 = vmatpush1.msra.mxu0 0.0
    %942 = vmatprep.subr.mxu0 0.0
    %943 = vmatpush1.msra.mxu0 0.0
    %944 = vmatprep.subr.mxu0 0.0
    %945 = vmatpush1.msra.mxu0 0.0
    %946 = vmatprep.subr.mxu0 0.0
    %947 = vmatpush1.msra.mxu0 0.0
    %948 = vmatprep.subr.mxu0 0.0
    %949 = vmatpush1.msra.mxu0 0.0
    %950 = vmatprep.subr.mxu0 0.0
    %951 = vmatpush1.msra.mxu0 0.0
    %952 = vmatprep.subr.mxu0 0.0
    %953 = vmatpush1.msra.mxu0 0.0
    %954 = vmatprep.mubr.f32.mxu0 0.0
    %955 = vmatmul.mubr.f32.gmra.mrb[0].mxu0 %v885
    %v956 = vpop.f32.mrb[0].mxu0
    %v957 = vadd.f32 0.0, %v956
    %v958 = vpop.f32.mrb[0].mxu0
    %959 = vmatprep.mubr.f32.mxu0 0.0
    %960 = vmatmul.mubr.f32.gmra.mrb[0].mxu0 %v888
    %v961 = vpop.f32.mrb[0].mxu0
    %v962 = vadd.f32 0.0, %v961
    %v963 = vpop.f32.mrb[0].mxu0
    %964 = vdwg.mxu0
    %967 = vrot.lane.b32.xlu0 %v549, 8
    %v968 = vpop.permute.xlu0 %967
    %969 = vrot.lane.b32.xlu0 %v554, 8
    %v970 = vpop.permute.xlu0 %969
    %975 = vrot.lane.b32.xlu0 %v753, 16
    %v976 = vpop.permute.xlu0 %975
    %977 = vrot.lane.b32.xlu0 %v758, 16
    %v978 = vpop.permute.xlu0 %977
    %983 = vrot.lane.b32.xlu0 %v957, 24
    %v984 = vpop.permute.xlu0 %983
    %985 = vrot.lane.b32.xlu0 %v962, 24
    %v986 = vpop.permute.xlu0 %985
    %v989 = vsel %vm155, %v345, %v968
    %v990 = vsel %vm155, %v350, %v970
    %v991 = vsel %vm243, %v989, %v976
    %v992 = vsel %vm243, %v990, %v978
    %vm993 = vcmask 195584
    %v994 = vsel %vm993, %v991, %v984
    %v995 = vsel %vm993, %v992, %v986
    %v996 = vpack.c.bf16 %v995, %v994
    %997 = vrot.lane.b32.xlu0 %v101, 32
    %v998 = vpop.permute.xlu0 %997
    %999 = vrot.lane.b32.xlu0 %v102, 32
    %v1000 = vpop.permute.xlu0 %999
    %1004 = vrot.lane.b32.xlu0 %v92, 32
    %v1005 = vpop.permute.xlu0 %1004
    %v1008 = vsel %vm48, %v996, 0
    %1010 = vmatprep.subr.bf16.mxu0 0
    %1011 = vmatpush1.bf16.msra.mxu0 %v998
    %1012 = vmatprep.subr.bf16.mxu0 0
    %1013 = vmatpush1.bf16.msra.mxu0 %v1000
    %1014 = vmatprep.subr.bf16.mxu0 0
    %1015 = vmatpush1.bf16.msra.mxu0 0
    %1016 = vmatprep.subr.bf16.mxu0 0
    %1017 = vmatpush1.bf16.msra.mxu0 0
    %1018 = vmatprep.subr.bf16.mxu0 0
    %1019 = vmatpush1.bf16.msra.mxu0 0
    %1020 = vmatprep.subr.bf16.mxu0 0
    %1021 = vmatpush1.bf16.msra.mxu0 0
    %1022 = vmatprep.subr.bf16.mxu0 0
    %1023 = vmatpush1.bf16.msra.mxu0 0
    %1024 = vmatprep.subr.bf16.mxu0 0
    %1025 = vmatpush1.bf16.msra.mxu0 0
    %1026 = vmatprep.subr.bf16.mxu0 0
    %1027 = vmatpush1.bf16.msra.mxu0 0
    %1028 = vmatprep.subr.bf16.mxu0 0
    %1029 = vmatpush1.bf16.msra.mxu0 0
    %1030 = vmatprep.subr.bf16.mxu0 0
    %1031 = vmatpush1.bf16.msra.mxu0 0
    %1032 = vmatprep.subr.bf16.mxu0 0
    %1033 = vmatpush1.bf16.msra.mxu0 0
    %1034 = vmatprep.subr.bf16.mxu0 0
    %1035 = vmatpush1.bf16.msra.mxu0 0
    %1036 = vmatprep.subr.bf16.mxu0 0
    %1037 = vmatpush1.bf16.msra.mxu0 0
    %1038 = vmatprep.subr.bf16.mxu0 0
    %1039 = vmatpush1.bf16.msra.mxu0 0
    %1040 = vmatprep.subr.bf16.mxu0 0
    %1041 = vmatpush1.bf16.msra.mxu0 0
    %1042 = vmatprep.mubr.bf16.mxu0 0
    %1043 = vmatmul.mubr.bf16.gmra.mrb[0].mxu0 %v1008
    %v1044 = vpop.f32.mrb[0].mxu0
    %v1045 = vadd.f32 %v1005, %v1044
    %v1046 = vpop.f32.mrb[0].mxu0
    %v1047 = vpop.f32.mrb[0].mxu0
    %v1048 = vadd.f32 %v1005, %v1047
    %v1049 = vpop.f32.mrb[0].mxu0
    %1050 = vdwg.mxu0
    %v1051 = vadd.f32 %v33, %v1045
    %v1052 = vadd.f32 %v34, %v1048
    %v1053 = vsel %vm48, %v1051, 0.0
    %1054 = vadd.xlane.f32.xlu0 %v1053
    %v1055 = vpop.xlane.xlu0 %1054
    %v1056 = vsel %vm48, %v1052, 0.0
    %1057 = vadd.xlane.f32.xlu0 %v1056
    %v1058 = vpop.xlane.xlu0 %1057
    %v1059 = vmul.f32 %v1055, %v55
    %v1060 = vmul.f32 %v1058, %v55
    %v1061 = vsub.f32 %v1051, %v1059
    %v1062 = vsub.f32 %v1052, %v1060
    %v1063 = vmul.f32 %v1061, %v1061
    %v1064 = vmul.f32 %v1062, %v1062
    %v1065 = vsel %vm48, %v1063, 0.0
    %1066 = vadd.xlane.f32.xlu0 %v1065
    %v1067 = vpop.xlane.xlu0 %1066
    %v1068 = vsel %vm48, %v1064, 0.0
    %1069 = vadd.xlane.f32.xlu0 %v1068
    %v1070 = vpop.xlane.xlu0 %1069
    %v1071 = vmul.f32 %v1067, %v55
    %v1072 = vmul.f32 %v1070, %v55
    %v1073 = vadd.f32 %v1071, 1e-06
    %v1074 = vadd.f32 %v1072, 1e-06
    %v1075 = vrsqrt.pop %v1073
    %v1076 = vrsqrt.pop %v1074
    %v1077 = vmul.f32 %v1061, %v1075
    %v1078 = vmul.f32 %v1062, %v1076
    %1079 = vrot.lane.b32.xlu0 %v79, 64
    %v1080 = vpop.permute.xlu0 %1079
    %v1082 = vmul.f32 %v1077, %v1080
    %v1083 = vmul.f32 %v1078, %v1080
    %1084 = vrot.lane.b32.xlu0 %v79, 32
    %v1085 = vpop.permute.xlu0 %1084
    %v1087 = vadd.f32 %v1082, %v1085
    %v1088 = vadd.f32 %v1083, %v1085
    %v1089 = vpack.c.bf16 %v1088, %v1087
    %v1090 = vlaneseq
    %v1091 = vshrl.u32 %v1090, 7
    %v1092 = vsub.s32 0, %v1091
    %v1093 = vrot.slane %v39, %v1092
    %v1098 = vunpack.c.l.b16 %v44
    %v1099 = vunpack.c.l.b16 %v45
    %v1100 = vunpack.c.l.b16 %v46
    %v1101 = vunpack.c.l.b16 %v47
    %v1102 = vpack.c.b16 %v1099, %v1098
    %v1103 = vpack.c.b16 %v1101, %v1100
    %v1107 = vsel %vm48, %v1089, 0
    %1109 = vmatprep.subr.bf16.mxu0 0
    %1110 = vmatpush1.bf16.msra.mxu0 %v1102
    %1111 = vmatprep.subr.bf16.mxu0 0
    %1112 = vmatpush1.bf16.msra.mxu0 %v1103
    %1113 = vmatprep.subr.bf16.mxu0 0
    %1114 = vmatpush1.bf16.msra.mxu0 0
    %1115 = vmatprep.subr.bf16.mxu0 0
    %1116 = vmatpush1.bf16.msra.mxu0 0
    %1117 = vmatprep.subr.bf16.mxu0 0
    %1118 = vmatpush1.bf16.msra.mxu0 0
    %1119 = vmatprep.subr.bf16.mxu0 0
    %1120 = vmatpush1.bf16.msra.mxu0 0
    %1121 = vmatprep.subr.bf16.mxu0 0
    %1122 = vmatpush1.bf16.msra.mxu0 0
    %1123 = vmatprep.subr.bf16.mxu0 0
    %1124 = vmatpush1.bf16.msra.mxu0 0
    %1125 = vmatprep.subr.bf16.mxu0 0
    %1126 = vmatpush1.bf16.msra.mxu0 0
    %1127 = vmatprep.subr.bf16.mxu0 0
    %1128 = vmatpush1.bf16.msra.mxu0 0
    %1129 = vmatprep.subr.bf16.mxu0 0
    %1130 = vmatpush1.bf16.msra.mxu0 0
    %1131 = vmatprep.subr.bf16.mxu0 0
    %1132 = vmatpush1.bf16.msra.mxu0 0
    %1133 = vmatprep.subr.bf16.mxu0 0
    %1134 = vmatpush1.bf16.msra.mxu0 0
    %1135 = vmatprep.subr.bf16.mxu0 0
    %1136 = vmatpush1.bf16.msra.mxu0 0
    %1137 = vmatprep.subr.bf16.mxu0 0
    %1138 = vmatpush1.bf16.msra.mxu0 0
    %1139 = vmatprep.subr.bf16.mxu0 0
    %1140 = vmatpush1.bf16.msra.mxu0 0
    %1141 = vmatprep.mubr.bf16.mxu0 0
    %1142 = vmatmul.mubr.bf16.gmra.mrb[0].mxu0 %v1107
    %v1143 = vpop.f32.mrb[0].mxu0
    %v1144 = vadd.f32 %v1093, %v1143
    %v1145 = vpop.f32.mrb[0].mxu0
    %v1146 = vpop.f32.mrb[0].mxu0
    %v1147 = vadd.f32 %v1093, %v1146
    %v1148 = vpop.f32.mrb[0].mxu0
    %1149 = vdwg.mxu0
    %v1150 = vmax.f32 %v1144, 0.0
    %v1151 = vmax.f32 %v1147, 0.0
    %v1152 = vpack.c.bf16 %v1151, %v1150
    %1153 = vrot.lane.b32.xlu0 %v1102, 64
    %v1154 = vpop.permute.xlu0 %1153
    %1155 = vrot.lane.b32.xlu0 %v1103, 64
    %v1156 = vpop.permute.xlu0 %1155
    %1158 = vrot.lane.b32.xlu0 %v1093, 64
    %v1159 = vpop.permute.xlu0 %1158
    %vm1161 = vcmask 523264
    %v1163 = vsel %vm1161, %v1152, 0
    %v1166 = vsel %vm1161, %v1154, 0
    %v1169 = vsel %vm1161, %v1156, 0
    %1171 = vmatprep.subr.bf16.mxu0 0
    %1172 = vmatpush1.bf16.xpose.msra.mxu0 %v1166
    %1173 = vmatprep.subr.bf16.mxu0 0
    %1174 = vmatpush1.bf16.xpose.msra.mxu0 %v1169
    %1175 = vmatprep.subr.bf16.mxu0 0
    %1176 = vmatpush1.bf16.xpose.msra.mxu0 0
    %1177 = vmatprep.subr.bf16.mxu0 0
    %1178 = vmatpush1.bf16.xpose.msra.mxu0 0
    %1179 = vmatprep.subr.bf16.mxu0 0
    %1180 = vmatpush1.bf16.xpose.msra.mxu0 0
    %1181 = vmatprep.subr.bf16.mxu0 0
    %1182 = vmatpush1.bf16.xpose.msra.mxu0 0
    %1183 = vmatprep.subr.bf16.mxu0 0
    %1184 = vmatpush1.bf16.xpose.msra.mxu0 0
    %1185 = vmatprep.subr.bf16.mxu0 0
    %1186 = vmatpush1.bf16.xpose.msra.mxu0 0
    %1187 = vmatprep.subr.bf16.mxu0 0
    %1188 = vmatpush1.bf16.xpose.msra.mxu0 0
    %1189 = vmatprep.subr.bf16.mxu0 0
    %1190 = vmatpush1.bf16.xpose.msra.mxu0 0
    %1191 = vmatprep.subr.bf16.mxu0 0
    %1192 = vmatpush1.bf16.xpose.msra.mxu0 0
    %1193 = vmatprep.subr.bf16.mxu0 0
    %1194 = vmatpush1.bf16.xpose.msra.mxu0 0
    %1195 = vmatprep.subr.bf16.mxu0 0
    %1196 = vmatpush1.bf16.xpose.msra.mxu0 0
    %1197 = vmatprep.subr.bf16.mxu0 0
    %1198 = vmatpush1.bf16.xpose.msra.mxu0 0
    %1199 = vmatprep.subr.bf16.mxu0 0
    %1200 = vmatpush1.bf16.xpose.msra.mxu0 0
    %1201 = vmatprep.subr.bf16.mxu0 0
    %1202 = vmatpush1.bf16.xpose.msra.mxu0 0
    %1203 = vmatprep.mubr.bf16.mxu0 0
    %1204 = vmatmul.mubr.bf16.gmra.mrb[0].mxu0 %v1163
    %v1205 = vpop.f32.mrb[0].mxu0
    %v1206 = vadd.f32 %v1159, %v1205
    %v1207 = vpop.f32.mrb[0].mxu0
    %v1208 = vpop.f32.mrb[0].mxu0
    %v1209 = vadd.f32 %v1159, %v1208
    %v1210 = vpop.f32.mrb[0].mxu0
    %1211 = vdwg.mxu0
    %v1212 = vadd.f32 %v1051, %v1206
    %v1213 = vadd.f32 %v1052, %v1209
    %v1214 = vld [vmem:[%s3 + $0x3] sm:$0x1]
    %v1215 = vld [vmem:[%s3 + $0x4] sm:$0x1]
    %v1216 = vld [vmem:[%s3 + $0x5] sm:$0x1]
    %v1217 = vld [vmem:[#allocation2 + $0x20] sm:$0xf]
    %v1218 = vld [vmem:[#allocation2 + $0x24] sm:$0xf]
    %v1219 = vld [vmem:[#allocation2 + $0x28] sm:$0xf]
    %v1220 = vld [vmem:[#allocation2 + $0x2c] sm:$0xf]
    %v1221 = vld [vmem:[#allocation2 + $0x30] sm:$0xf]
    %v1222 = vld [vmem:[#allocation2 + $0x34] sm:$0xf]
    %v1223 = vld [vmem:[#allocation2 + $0x38] sm:$0xf]
    %v1224 = vld [vmem:[#allocation2 + $0x3c] sm:$0xf]
    %v1225 = vsel %vm48, %v1212, 0.0
    %1226 = vadd.xlane.f32.xlu0 %v1225
    %v1227 = vpop.xlane.xlu0 %1226
    %v1228 = vsel %vm48, %v1213, 0.0
    %1229 = vadd.xlane.f32.xlu0 %v1228
    %v1230 = vpop.xlane.xlu0 %1229
    %v1231 = vmul.f32 %v1227, %v55
    %v1232 = vmul.f32 %v1230, %v55
    %v1233 = vsub.f32 %v1212, %v1231
    %v1234 = vsub.f32 %v1213, %v1232
    %v1235 = vmul.f32 %v1233, %v1233
    %v1236 = vmul.f32 %v1234, %v1234
    %v1237 = vsel %vm48, %v1235, 0.0
    %1238 = vadd.xlane.f32.xlu0 %v1237
    %v1239 = vpop.xlane.xlu0 %1238
    %v1240 = vsel %vm48, %v1236, 0.0
    %1241 = vadd.xlane.f32.xlu0 %v1240
    %v1242 = vpop.xlane.xlu0 %1241
    %v1243 = vmul.f32 %v1239, %v55
    %v1244 = vmul.f32 %v1242, %v55
    %v1245 = vadd.f32 %v1243, 1e-06
    %v1246 = vadd.f32 %v1244, 1e-06
    %v1247 = vrsqrt.pop %v1245
    %v1248 = vrsqrt.pop %v1246
    %v1249 = vmul.f32 %v1233, %v1247
    %v1250 = vmul.f32 %v1234, %v1248
    %v1251 = vlaneseq
    %v1252 = vshrl.u32 %v1251, 7
    %v1253 = vsub.s32 0, %v1252
    %v1254 = vrot.slane %v1214, %v1253
    %v1255 = vmul.f32 %v1249, %v1254
    %v1256 = vmul.f32 %v1250, %v1254
    %1258 = vrot.lane.b32.xlu0 %v1254, 96
    %v1259 = vpop.permute.xlu0 %1258
    %v1261 = vadd.f32 %v1255, %v1259
    %v1262 = vadd.f32 %v1256, %v1259
    %v1263 = vpack.c.bf16 %v1262, %v1261
    %v1264 = vlaneseq
    %v1265 = vshrl.u32 %v1264, 7
    %v1266 = vsub.s32 0, %v1265
    %v1267 = vrot.slane %v1215, %v1266
    %v1272 = vunpack.c.l.b16 %v1217
    %v1273 = vunpack.c.l.b16 %v1218
    %v1274 = vunpack.c.l.b16 %v1219
    %v1275 = vunpack.c.l.b16 %v1220
    %v1276 = vpack.c.b16 %v1273, %v1272
    %v1277 = vpack.c.b16 %v1275, %v1274
    %v1281 = vsel %vm48, %v1263, 0
    %1283 = vmatprep.subr.bf16.mxu0 0
    %1284 = vmatpush1.bf16.msra.mxu0 %v1276
    %1285 = vmatprep.subr.bf16.mxu0 0
    %1286 = vmatpush1.bf16.msra.mxu0 %v1277
    %1287 = vmatprep.subr.bf16.mxu0 0
    %1288 = vmatpush1.bf16.msra.mxu0 0
    %1289 = vmatprep.subr.bf16.mxu0 0
    %1290 = vmatpush1.bf16.msra.mxu0 0
    %1291 = vmatprep.subr.bf16.mxu0 0
    %1292 = vmatpush1.bf16.msra.mxu0 0
    %1293 = vmatprep.subr.bf16.mxu0 0
    %1294 = vmatpush1.bf16.msra.mxu0 0
    %1295 = vmatprep.subr.bf16.mxu0 0
    %1296 = vmatpush1.bf16.msra.mxu0 0
    %1297 = vmatprep.subr.bf16.mxu0 0
    %1298 = vmatpush1.bf16.msra.mxu0 0
    %1299 = vmatprep.subr.bf16.mxu0 0
    %1300 = vmatpush1.bf16.msra.mxu0 0
    %1301 = vmatprep.subr.bf16.mxu0 0
    %1302 = vmatpush1.bf16.msra.mxu0 0
    %1303 = vmatprep.subr.bf16.mxu0 0
    %1304 = vmatpush1.bf16.msra.mxu0 0
    %1305 = vmatprep.subr.bf16.mxu0 0
    %1306 = vmatpush1.bf16.msra.mxu0 0
    %1307 = vmatprep.subr.bf16.mxu0 0
    %1308 = vmatpush1.bf16.msra.mxu0 0
    %1309 = vmatprep.subr.bf16.mxu0 0
    %1310 = vmatpush1.bf16.msra.mxu0 0
    %1311 = vmatprep.subr.bf16.mxu0 0
    %1312 = vmatpush1.bf16.msra.mxu0 0
    %1313 = vmatprep.subr.bf16.mxu0 0
    %1314 = vmatpush1.bf16.msra.mxu0 0
    %1315 = vmatprep.mubr.bf16.mxu0 0
    %1316 = vmatmul.mubr.bf16.gmra.mrb[0].mxu0 %v1281
    %v1317 = vpop.f32.mrb[0].mxu0
    %v1318 = vadd.f32 %v1267, %v1317
    %v1319 = vpop.f32.mrb[0].mxu0
    %v1320 = vpop.f32.mrb[0].mxu0
    %v1321 = vadd.f32 %v1267, %v1320
    %v1322 = vpop.f32.mrb[0].mxu0
    %1323 = vdwg.mxu0
    %1326 = vrot.lane.b32.xlu0 %v1318, 96
    %v1327 = vpop.permute.xlu0 %1326
    %1328 = vrot.lane.b32.xlu0 %v1321, 96
    %v1329 = vpop.permute.xlu0 %1328
    %v1330 = vsel %vm155, %v1318, 0
    %v1332 = vsel %vm155, %v1321, 0
    %v1334 = vsel %vm155, %v1327, 0
    %v1336 = vsel %vm155, %v1329, 0
    %1338 = vmatprep.subr.mxu0 0.0
    %1339 = vmatpush1.xpose.msra.mxu0 %v1334
    %1340 = vmatprep.subr.mxu0 0.0
    %1341 = vmatpush1.xpose.msra.mxu0 %v1336
    %1342 = vmatprep.subr.mxu0 0.0
    %1343 = vmatpush1.xpose.msra.mxu0 0.0
    %1344 = vmatprep.subr.mxu0 0.0
    %1345 = vmatpush1.xpose.msra.mxu0 0.0
    %1346 = vmatprep.subr.mxu0 0.0
    %1347 = vmatpush1.xpose.msra.mxu0 0.0
    %1348 = vmatprep.subr.mxu0 0.0
    %1349 = vmatpush1.xpose.msra.mxu0 0.0
    %1350 = vmatprep.subr.mxu0 0.0
    %1351 = vmatpush1.xpose.msra.mxu0 0.0
    %1352 = vmatprep.subr.mxu0 0.0
    %1353 = vmatpush1.xpose.msra.mxu0 0.0
    %1354 = vmatprep.subr.mxu0 0.0
    %1355 = vmatpush1.xpose.msra.mxu0 0.0
    %1356 = vmatprep.subr.mxu0 0.0
    %1357 = vmatpush1.xpose.msra.mxu0 0.0
    %1358 = vmatprep.subr.mxu0 0.0
    %1359 = vmatpush1.xpose.msra.mxu0 0.0
    %1360 = vmatprep.subr.mxu0 0.0
    %1361 = vmatpush1.xpose.msra.mxu0 0.0
    %1362 = vmatprep.subr.mxu0 0.0
    %1363 = vmatpush1.xpose.msra.mxu0 0.0
    %1364 = vmatprep.subr.mxu0 0.0
    %1365 = vmatpush1.xpose.msra.mxu0 0.0
    %1366 = vmatprep.subr.mxu0 0.0
    %1367 = vmatpush1.xpose.msra.mxu0 0.0
    %1368 = vmatprep.subr.mxu0 0.0
    %1369 = vmatpush1.xpose.msra.mxu0 0.0
    %1370 = vmatprep.subr.mxu0 0.0
    %1371 = vmatpush1.xpose.msra.mxu0 0.0
    %1372 = vmatprep.subr.mxu0 0.0
    %1373 = vmatpush1.xpose.msra.mxu0 0.0
    %1374 = vmatprep.subr.mxu0 0.0
    %1375 = vmatpush1.xpose.msra.mxu0 0.0
    %1376 = vmatprep.subr.mxu0 0.0
    %1377 = vmatpush1.xpose.msra.mxu0 0.0
    %1378 = vmatprep.subr.mxu0 0.0
    %1379 = vmatpush1.xpose.msra.mxu0 0.0
    %1380 = vmatprep.subr.mxu0 0.0
    %1381 = vmatpush1.xpose.msra.mxu0 0.0
    %1382 = vmatprep.subr.mxu0 0.0
    %1383 = vmatpush1.xpose.msra.mxu0 0.0
    %1384 = vmatprep.subr.mxu0 0.0
    %1385 = vmatpush1.xpose.msra.mxu0 0.0
    %1386 = vmatprep.subr.mxu0 0.0
    %1387 = vmatpush1.xpose.msra.mxu0 0.0
    %1388 = vmatprep.subr.mxu0 0.0
    %1389 = vmatpush1.xpose.msra.mxu0 0.0
    %1390 = vmatprep.subr.mxu0 0.0
    %1391 = vmatpush1.xpose.msra.mxu0 0.0
    %1392 = vmatprep.subr.mxu0 0.0
    %1393 = vmatpush1.xpose.msra.mxu0 0.0
    %1394 = vmatprep.subr.mxu0 0.0
    %1395 = vmatpush1.xpose.msra.mxu0 0.0
    %1396 = vmatprep.subr.mxu0 0.0
    %1397 = vmatpush1.xpose.msra.mxu0 0.0
    %1398 = vmatprep.subr.mxu0 0.0
    %1399 = vmatpush1.xpose.msra.mxu0 0.0
    %1400 = vmatprep.subr.mxu0 0.0
    %1401 = vmatpush1.xpose.msra.mxu0 0.0
    %1402 = vmatprep.mubr.f32.mxu0 0.0
    %1403 = vmatmul.mubr.f32.gmra.mrb[0].mxu0 %v1330
    %v1404 = vpop.f32.mrb[0].mxu0
    %v1405 = vadd.f32 0.0, %v1404
    %v1406 = vpop.f32.mrb[0].mxu0
    %1407 = vmatprep.mubr.f32.mxu0 0.0
    %1408 = vmatmul.mubr.f32.gmra.mrb[0].mxu0 %v1332
    %v1409 = vpop.f32.mrb[0].mxu0
    %v1410 = vadd.f32 0.0, %v1409
    %v1411 = vpop.f32.mrb[0].mxu0
    %1412 = vdwg.mxu0
    %v1413 = vmul.f32 %v1405, 0.35355338
    %v1414 = vmul.f32 %v1410, 0.35355338
    %v1415 = vadd.f32 %v1413, %v35
    %v1416 = vadd.f32 %v1414, %v36
    %v1417 = vsel %vm243, %v1415, -inf
    %1418 = vmax.xlane.f32.xlu0 %v1417
    %v1419 = vpop.xlane.xlu0 %1418
    %v1420 = vsel %vm243, %v1416, -inf
    %1421 = vmax.xlane.f32.xlu0 %v1420
    %v1422 = vpop.xlane.xlu0 %1421
    %v1423 = vsub.f32 %v1415, %v1419
    %v1424 = vsub.f32 %v1416, %v1422
    %v1425 = vmul.f32 %v1423, 1.442695
    %v1426 = vpow.pop %v1425
    %v1427 = vmul.f32 %v1424, 1.442695
    %v1428 = vpow.pop %v1427
    %v1429 = vsel %vm243, %v1426, 0.0
    %1430 = vadd.xlane.f32.xlu0 %v1429
    %v1431 = vpop.xlane.xlu0 %1430
    %v1432 = vsel %vm243, %v1428, 0.0
    %1433 = vadd.xlane.f32.xlu0 %v1432
    %v1434 = vpop.xlane.xlu0 %1433
    %v1435 = vrcp.pop %v1431
    %v1436 = vrcp.pop %v1434
    %v1437 = vmul.f32 %v1426, %v1435
    %v1438 = vmul.f32 %v1428, %v1436
    %1439 = vrot.lane.b32.xlu0 %v1318, 64
    %v1440 = vpop.permute.xlu0 %1439
    %1441 = vrot.lane.b32.xlu0 %v1321, 64
    %v1442 = vpop.permute.xlu0 %1441
    %v1446 = vsel %vm243, %v1437, 0
    %v1449 = vsel %vm243, %v1438, 0
    %1451 = vmatprep.subr.mxu0 0.0
    %1452 = vmatpush1.msra.mxu0 %v1440
    %1453 = vmatprep.subr.mxu0 0.0
    %1454 = vmatpush1.msra.mxu0 %v1442
    %1455 = vmatprep.subr.mxu0 0.0
    %1456 = vmatpush1.msra.mxu0 0.0
    %1457 = vmatprep.subr.mxu0 0.0
    %1458 = vmatpush1.msra.mxu0 0.0
    %1459 = vmatprep.subr.mxu0 0.0
    %1460 = vmatpush1.msra.mxu0 0.0
    %1461 = vmatprep.subr.mxu0 0.0
    %1462 = vmatpush1.msra.mxu0 0.0
    %1463 = vmatprep.subr.mxu0 0.0
    %1464 = vmatpush1.msra.mxu0 0.0
    %1465 = vmatprep.subr.mxu0 0.0
    %1466 = vmatpush1.msra.mxu0 0.0
    %1467 = vmatprep.subr.mxu0 0.0
    %1468 = vmatpush1.msra.mxu0 0.0
    %1469 = vmatprep.subr.mxu0 0.0
    %1470 = vmatpush1.msra.mxu0 0.0
    %1471 = vmatprep.subr.mxu0 0.0
    %1472 = vmatpush1.msra.mxu0 0.0
    %1473 = vmatprep.subr.mxu0 0.0
    %1474 = vmatpush1.msra.mxu0 0.0
    %1475 = vmatprep.subr.mxu0 0.0
    %1476 = vmatpush1.msra.mxu0 0.0
    %1477 = vmatprep.subr.mxu0 0.0
    %1478 = vmatpush1.msra.mxu0 0.0
    %1479 = vmatprep.subr.mxu0 0.0
    %1480 = vmatpush1.msra.mxu0 0.0
    %1481 = vmatprep.subr.mxu0 0.0
    %1482 = vmatpush1.msra.mxu0 0.0
    %1483 = vmatprep.subr.mxu0 0.0
    %1484 = vmatpush1.msra.mxu0 0.0
    %1485 = vmatprep.subr.mxu0 0.0
    %1486 = vmatpush1.msra.mxu0 0.0
    %1487 = vmatprep.subr.mxu0 0.0
    %1488 = vmatpush1.msra.mxu0 0.0
    %1489 = vmatprep.subr.mxu0 0.0
    %1490 = vmatpush1.msra.mxu0 0.0
    %1491 = vmatprep.subr.mxu0 0.0
    %1492 = vmatpush1.msra.mxu0 0.0
    %1493 = vmatprep.subr.mxu0 0.0
    %1494 = vmatpush1.msra.mxu0 0.0
    %1495 = vmatprep.subr.mxu0 0.0
    %1496 = vmatpush1.msra.mxu0 0.0
    %1497 = vmatprep.subr.mxu0 0.0
    %1498 = vmatpush1.msra.mxu0 0.0
    %1499 = vmatprep.subr.mxu0 0.0
    %1500 = vmatpush1.msra.mxu0 0.0
    %1501 = vmatprep.subr.mxu0 0.0
    %1502 = vmatpush1.msra.mxu0 0.0
    %1503 = vmatprep.subr.mxu0 0.0
    %1504 = vmatpush1.msra.mxu0 0.0
    %1505 = vmatprep.subr.mxu0 0.0
    %1506 = vmatpush1.msra.mxu0 0.0
    %1507 = vmatprep.subr.mxu0 0.0
    %1508 = vmatpush1.msra.mxu0 0.0
    %1509 = vmatprep.subr.mxu0 0.0
    %1510 = vmatpush1.msra.mxu0 0.0
    %1511 = vmatprep.subr.mxu0 0.0
    %1512 = vmatpush1.msra.mxu0 0.0
    %1513 = vmatprep.subr.mxu0 0.0
    %1514 = vmatpush1.msra.mxu0 0.0
    %1515 = vmatprep.mubr.f32.mxu0 0.0
    %1516 = vmatmul.mubr.f32.gmra.mrb[0].mxu0 %v1446
    %v1517 = vpop.f32.mrb[0].mxu0
    %v1518 = vadd.f32 0.0, %v1517
    %v1519 = vpop.f32.mrb[0].mxu0
    %1520 = vmatprep.mubr.f32.mxu0 0.0
    %1521 = vmatmul.mubr.f32.gmra.mrb[0].mxu0 %v1449
    %v1522 = vpop.f32.mrb[0].mxu0
    %v1523 = vadd.f32 0.0, %v1522
    %v1524 = vpop.f32.mrb[0].mxu0
    %1525 = vdwg.mxu0
    %1526 = vrot.lane.b32.xlu0 %v1318, 120
    %v1527 = vpop.permute.xlu0 %1526
    %1528 = vrot.lane.b32.xlu0 %v1321, 120
    %v1529 = vpop.permute.xlu0 %1528
    %1530 = vrot.lane.b32.xlu0 %v1318, 88
    %v1531 = vpop.permute.xlu0 %1530
    %1532 = vrot.lane.b32.xlu0 %v1321, 88
    %v1533 = vpop.permute.xlu0 %1532
    %v1534 = vsel %vm155, %v1527, 0
    %v1536 = vsel %vm155, %v1529, 0
    %v1538 = vsel %vm155, %v1531, 0
    %v1540 = vsel %vm155, %v1533, 0
    %1542 = vmatprep.subr.mxu0 0.0
    %1543 = vmatpush1.xpose.msra.mxu0 %v1538
    %1544 = vmatprep.subr.mxu0 0.0
    %1545 = vmatpush1.xpose.msra.mxu0 %v1540
    %1546 = vmatprep.subr.mxu0 0.0
    %1547 = vmatpush1.xpose.msra.mxu0 0.0
    %1548 = vmatprep.subr.mxu0 0.0
    %1549 = vmatpush1.xpose.msra.mxu0 0.0
    %1550 = vmatprep.subr.mxu0 0.0
    %1551 = vmatpush1.xpose.msra.mxu0 0.0
    %1552 = vmatprep.subr.mxu0 0.0
    %1553 = vmatpush1.xpose.msra.mxu0 0.0
    %1554 = vmatprep.subr.mxu0 0.0
    %1555 = vmatpush1.xpose.msra.mxu0 0.0
    %1556 = vmatprep.subr.mxu0 0.0
    %1557 = vmatpush1.xpose.msra.mxu0 0.0
    %1558 = vmatprep.subr.mxu0 0.0
    %1559 = vmatpush1.xpose.msra.mxu0 0.0
    %1560 = vmatprep.subr.mxu0 0.0
    %1561 = vmatpush1.xpose.msra.mxu0 0.0
    %1562 = vmatprep.subr.mxu0 0.0
    %1563 = vmatpush1.xpose.msra.mxu0 0.0
    %1564 = vmatprep.subr.mxu0 0.0
    %1565 = vmatpush1.xpose.msra.mxu0 0.0
    %1566 = vmatprep.subr.mxu0 0.0
    %1567 = vmatpush1.xpose.msra.mxu0 0.0
    %1568 = vmatprep.subr.mxu0 0.0
    %1569 = vmatpush1.xpose.msra.mxu0 0.0
    %1570 = vmatprep.subr.mxu0 0.0
    %1571 = vmatpush1.xpose.msra.mxu0 0.0
    %1572 = vmatprep.subr.mxu0 0.0
    %1573 = vmatpush1.xpose.msra.mxu0 0.0
    %1574 = vmatprep.subr.mxu0 0.0
    %1575 = vmatpush1.xpose.msra.mxu0 0.0
    %1576 = vmatprep.subr.mxu0 0.0
    %1577 = vmatpush1.xpose.msra.mxu0 0.0
    %1578 = vmatprep.subr.mxu0 0.0
    %1579 = vmatpush1.xpose.msra.mxu0 0.0
    %1580 = vmatprep.subr.mxu0 0.0
    %1581 = vmatpush1.xpose.msra.mxu0 0.0
    %1582 = vmatprep.subr.mxu0 0.0
    %1583 = vmatpush1.xpose.msra.mxu0 0.0
    %1584 = vmatprep.subr.mxu0 0.0
    %1585 = vmatpush1.xpose.msra.mxu0 0.0
    %1586 = vmatprep.subr.mxu0 0.0
    %1587 = vmatpush1.xpose.msra.mxu0 0.0
    %1588 = vmatprep.subr.mxu0 0.0
    %1589 = vmatpush1.xpose.msra.mxu0 0.0
    %1590 = vmatprep.subr.mxu0 0.0
    %1591 = vmatpush1.xpose.msra.mxu0 0.0
    %1592 = vmatprep.subr.mxu0 0.0
    %1593 = vmatpush1.xpose.msra.mxu0 0.0
    %1594 = vmatprep.subr.mxu0 0.0
    %1595 = vmatpush1.xpose.msra.mxu0 0.0
    %1596 = vmatprep.subr.mxu0 0.0
    %1597 = vmatpush1.xpose.msra.mxu0 0.0
    %1598 = vmatprep.subr.mxu0 0.0
    %1599 = vmatpush1.xpose.msra.mxu0 0.0
    %1600 = vmatprep.subr.mxu0 0.0
    %1601 = vmatpush1.xpose.msra.mxu0 0.0
    %1602 = vmatprep.subr.mxu0 0.0
    %1603 = vmatpush1.xpose.msra.mxu0 0.0
    %1604 = vmatprep.subr.mxu0 0.0
    %1605 = vmatpush1.xpose.msra.mxu0 0.0
    %1606 = vmatprep.mubr.f32.mxu0 0.0
    %1607 = vmatmul.mubr.f32.gmra.mrb[0].mxu0 %v1534
    %v1608 = vpop.f32.mrb[0].mxu0
    %v1609 = vadd.f32 0.0, %v1608
    %v1610 = vpop.f32.mrb[0].mxu0
    %1611 = vmatprep.mubr.f32.mxu0 0.0
    %1612 = vmatmul.mubr.f32.gmra.mrb[0].mxu0 %v1536
    %v1613 = vpop.f32.mrb[0].mxu0
    %v1614 = vadd.f32 0.0, %v1613
    %v1615 = vpop.f32.mrb[0].mxu0
    %1616 = vdwg.mxu0
    %v1617 = vmul.f32 %v1609, 0.35355338
    %v1618 = vmul.f32 %v1614, 0.35355338
    %v1619 = vadd.f32 %v1617, %v35
    %v1620 = vadd.f32 %v1618, %v36
    %v1621 = vsel %vm243, %v1619, -inf
    %1622 = vmax.xlane.f32.xlu0 %v1621
    %v1623 = vpop.xlane.xlu0 %1622
    %v1624 = vsel %vm243, %v1620, -inf
    %1625 = vmax.xlane.f32.xlu0 %v1624
    %v1626 = vpop.xlane.xlu0 %1625
    %v1627 = vsub.f32 %v1619, %v1623
    %v1628 = vsub.f32 %v1620, %v1626
    %v1629 = vmul.f32 %v1627, 1.442695
    %v1630 = vpow.pop %v1629
    %v1631 = vmul.f32 %v1628, 1.442695
    %v1632 = vpow.pop %v1631
    %v1633 = vsel %vm243, %v1630, 0.0
    %1634 = vadd.xlane.f32.xlu0 %v1633
    %v1635 = vpop.xlane.xlu0 %1634
    %v1636 = vsel %vm243, %v1632, 0.0
    %1637 = vadd.xlane.f32.xlu0 %v1636
    %v1638 = vpop.xlane.xlu0 %1637
    %v1639 = vrcp.pop %v1635
    %v1640 = vrcp.pop %v1638
    %v1641 = vmul.f32 %v1630, %v1639
    %v1642 = vmul.f32 %v1632, %v1640
    %1643 = vrot.lane.b32.xlu0 %v1318, 56
    %v1644 = vpop.permute.xlu0 %1643
    %1645 = vrot.lane.b32.xlu0 %v1321, 56
    %v1646 = vpop.permute.xlu0 %1645
    %v1650 = vsel %vm243, %v1641, 0
    %v1653 = vsel %vm243, %v1642, 0
    %1655 = vmatprep.subr.mxu0 0.0
    %1656 = vmatpush1.msra.mxu0 %v1644
    %1657 = vmatprep.subr.mxu0 0.0
    %1658 = vmatpush1.msra.mxu0 %v1646
    %1659 = vmatprep.subr.mxu0 0.0
    %1660 = vmatpush1.msra.mxu0 0.0
    %1661 = vmatprep.subr.mxu0 0.0
    %1662 = vmatpush1.msra.mxu0 0.0
    %1663 = vmatprep.subr.mxu0 0.0
    %1664 = vmatpush1.msra.mxu0 0.0
    %1665 = vmatprep.subr.mxu0 0.0
    %1666 = vmatpush1.msra.mxu0 0.0
    %1667 = vmatprep.subr.mxu0 0.0
    %1668 = vmatpush1.msra.mxu0 0.0
    %1669 = vmatprep.subr.mxu0 0.0
    %1670 = vmatpush1.msra.mxu0 0.0
    %1671 = vmatprep.subr.mxu0 0.0
    %1672 = vmatpush1.msra.mxu0 0.0
    %1673 = vmatprep.subr.mxu0 0.0
    %1674 = vmatpush1.msra.mxu0 0.0
    %1675 = vmatprep.subr.mxu0 0.0
    %1676 = vmatpush1.msra.mxu0 0.0
    %1677 = vmatprep.subr.mxu0 0.0
    %1678 = vmatpush1.msra.mxu0 0.0
    %1679 = vmatprep.subr.mxu0 0.0
    %1680 = vmatpush1.msra.mxu0 0.0
    %1681 = vmatprep.subr.mxu0 0.0
    %1682 = vmatpush1.msra.mxu0 0.0
    %1683 = vmatprep.subr.mxu0 0.0
    %1684 = vmatpush1.msra.mxu0 0.0
    %1685 = vmatprep.subr.mxu0 0.0
    %1686 = vmatpush1.msra.mxu0 0.0
    %1687 = vmatprep.subr.mxu0 0.0
    %1688 = vmatpush1.msra.mxu0 0.0
    %1689 = vmatprep.subr.mxu0 0.0
    %1690 = vmatpush1.msra.mxu0 0.0
    %1691 = vmatprep.subr.mxu0 0.0
    %1692 = vmatpush1.msra.mxu0 0.0
    %1693 = vmatprep.subr.mxu0 0.0
    %1694 = vmatpush1.msra.mxu0 0.0
    %1695 = vmatprep.subr.mxu0 0.0
    %1696 = vmatpush1.msra.mxu0 0.0
    %1697 = vmatprep.subr.mxu0 0.0
    %1698 = vmatpush1.msra.mxu0 0.0
    %1699 = vmatprep.subr.mxu0 0.0
    %1700 = vmatpush1.msra.mxu0 0.0
    %1701 = vmatprep.subr.mxu0 0.0
    %1702 = vmatpush1.msra.mxu0 0.0
    %1703 = vmatprep.subr.mxu0 0.0
    %1704 = vmatpush1.msra.mxu0 0.0
    %1705 = vmatprep.subr.mxu0 0.0
    %1706 = vmatpush1.msra.mxu0 0.0
    %1707 = vmatprep.subr.mxu0 0.0
    %1708 = vmatpush1.msra.mxu0 0.0
    %1709 = vmatprep.subr.mxu0 0.0
    %1710 = vmatpush1.msra.mxu0 0.0
    %1711 = vmatprep.subr.mxu0 0.0
    %1712 = vmatpush1.msra.mxu0 0.0
    %1713 = vmatprep.subr.mxu0 0.0
    %1714 = vmatpush1.msra.mxu0 0.0
    %1715 = vmatprep.subr.mxu0 0.0
    %1716 = vmatpush1.msra.mxu0 0.0
    %1717 = vmatprep.subr.mxu0 0.0
    %1718 = vmatpush1.msra.mxu0 0.0
    %1719 = vmatprep.mubr.f32.mxu0 0.0
    %1720 = vmatmul.mubr.f32.gmra.mrb[0].mxu0 %v1650
    %v1721 = vpop.f32.mrb[0].mxu0
    %v1722 = vadd.f32 0.0, %v1721
    %v1723 = vpop.f32.mrb[0].mxu0
    %1724 = vmatprep.mubr.f32.mxu0 0.0
    %1725 = vmatmul.mubr.f32.gmra.mrb[0].mxu0 %v1653
    %v1726 = vpop.f32.mrb[0].mxu0
    %v1727 = vadd.f32 0.0, %v1726
    %v1728 = vpop.f32.mrb[0].mxu0
    %1729 = vdwg.mxu0
    %1730 = vrot.lane.b32.xlu0 %v1318, 112
    %v1731 = vpop.permute.xlu0 %1730
    %1732 = vrot.lane.b32.xlu0 %v1321, 112
    %v1733 = vpop.permute.xlu0 %1732
    %1734 = vrot.lane.b32.xlu0 %v1318, 80
    %v1735 = vpop.permute.xlu0 %1734
    %1736 = vrot.lane.b32.xlu0 %v1321, 80
    %v1737 = vpop.permute.xlu0 %1736
    %v1738 = vsel %vm155, %v1731, 0
    %v1740 = vsel %vm155, %v1733, 0
    %v1742 = vsel %vm155, %v1735, 0
    %v1744 = vsel %vm155, %v1737, 0
    %1746 = vmatprep.subr.mxu0 0.0
    %1747 = vmatpush1.xpose.msra.mxu0 %v1742
    %1748 = vmatprep.subr.mxu0 0.0
    %1749 = vmatpush1.xpose.msra.mxu0 %v1744
    %1750 = vmatprep.subr.mxu0 0.0
    %1751 = vmatpush1.xpose.msra.mxu0 0.0
    %1752 = vmatprep.subr.mxu0 0.0
    %1753 = vmatpush1.xpose.msra.mxu0 0.0
    %1754 = vmatprep.subr.mxu0 0.0
    %1755 = vmatpush1.xpose.msra.mxu0 0.0
    %1756 = vmatprep.subr.mxu0 0.0
    %1757 = vmatpush1.xpose.msra.mxu0 0.0
    %1758 = vmatprep.subr.mxu0 0.0
    %1759 = vmatpush1.xpose.msra.mxu0 0.0
    %1760 = vmatprep.subr.mxu0 0.0
    %1761 = vmatpush1.xpose.msra.mxu0 0.0
    %1762 = vmatprep.subr.mxu0 0.0
    %1763 = vmatpush1.xpose.msra.mxu0 0.0
    %1764 = vmatprep.subr.mxu0 0.0
    %1765 = vmatpush1.xpose.msra.mxu0 0.0
    %1766 = vmatprep.subr.mxu0 0.0
    %1767 = vmatpush1.xpose.msra.mxu0 0.0
    %1768 = vmatprep.subr.mxu0 0.0
    %1769 = vmatpush1.xpose.msra.mxu0 0.0
    %1770 = vmatprep.subr.mxu0 0.0
    %1771 = vmatpush1.xpose.msra.mxu0 0.0
    %1772 = vmatprep.subr.mxu0 0.0
    %1773 = vmatpush1.xpose.msra.mxu0 0.0
    %1774 = vmatprep.subr.mxu0 0.0
    %1775 = vmatpush1.xpose.msra.mxu0 0.0
    %1776 = vmatprep.subr.mxu0 0.0
    %1777 = vmatpush1.xpose.msra.mxu0 0.0
    %1778 = vmatprep.subr.mxu0 0.0
    %1779 = vmatpush1.xpose.msra.mxu0 0.0
    %1780 = vmatprep.subr.mxu0 0.0
    %1781 = vmatpush1.xpose.msra.mxu0 0.0
    %1782 = vmatprep.subr.mxu0 0.0
    %1783 = vmatpush1.xpose.msra.mxu0 0.0
    %1784 = vmatprep.subr.mxu0 0.0
    %1785 = vmatpush1.xpose.msra.mxu0 0.0
    %1786 = vmatprep.subr.mxu0 0.0
    %1787 = vmatpush1.xpose.msra.mxu0 0.0
    %1788 = vmatprep.subr.mxu0 0.0
    %1789 = vmatpush1.xpose.msra.mxu0 0.0
    %1790 = vmatprep.subr.mxu0 0.0
    %1791 = vmatpush1.xpose.msra.mxu0 0.0
    %1792 = vmatprep.subr.mxu0 0.0
    %1793 = vmatpush1.xpose.msra.mxu0 0.0
    %1794 = vmatprep.subr.mxu0 0.0
    %1795 = vmatpush1.xpose.msra.mxu0 0.0
    %1796 = vmatprep.subr.mxu0 0.0
    %1797 = vmatpush1.xpose.msra.mxu0 0.0
    %1798 = vmatprep.subr.mxu0 0.0
    %1799 = vmatpush1.xpose.msra.mxu0 0.0
    %1800 = vmatprep.subr.mxu0 0.0
    %1801 = vmatpush1.xpose.msra.mxu0 0.0
    %1802 = vmatprep.subr.mxu0 0.0
    %1803 = vmatpush1.xpose.msra.mxu0 0.0
    %1804 = vmatprep.subr.mxu0 0.0
    %1805 = vmatpush1.xpose.msra.mxu0 0.0
    %1806 = vmatprep.subr.mxu0 0.0
    %1807 = vmatpush1.xpose.msra.mxu0 0.0
    %1808 = vmatprep.subr.mxu0 0.0
    %1809 = vmatpush1.xpose.msra.mxu0 0.0
    %1810 = vmatprep.mubr.f32.mxu0 0.0
    %1811 = vmatmul.mubr.f32.gmra.mrb[0].mxu0 %v1738
    %v1812 = vpop.f32.mrb[0].mxu0
    %v1813 = vadd.f32 0.0, %v1812
    %v1814 = vpop.f32.mrb[0].mxu0
    %1815 = vmatprep.mubr.f32.mxu0 0.0
    %1816 = vmatmul.mubr.f32.gmra.mrb[0].mxu0 %v1740
    %v1817 = vpop.f32.mrb[0].mxu0
    %v1818 = vadd.f32 0.0, %v1817
    %v1819 = vpop.f32.mrb[0].mxu0
    %1820 = vdwg.mxu0
    %v1821 = vmul.f32 %v1813, 0.35355338
    %v1822 = vmul.f32 %v1818, 0.35355338
    %v1823 = vadd.f32 %v1821, %v35
    %v1824 = vadd.f32 %v1822, %v36
    %v1825 = vsel %vm243, %v1823, -inf
    %1826 = vmax.xlane.f32.xlu0 %v1825
    %v1827 = vpop.xlane.xlu0 %1826
    %v1828 = vsel %vm243, %v1824, -inf
    %1829 = vmax.xlane.f32.xlu0 %v1828
    %v1830 = vpop.xlane.xlu0 %1829
    %v1831 = vsub.f32 %v1823, %v1827
    %v1832 = vsub.f32 %v1824, %v1830
    %v1833 = vmul.f32 %v1831, 1.442695
    %v1834 = vpow.pop %v1833
    %v1835 = vmul.f32 %v1832, 1.442695
    %v1836 = vpow.pop %v1835
    %v1837 = vsel %vm243, %v1834, 0.0
    %1838 = vadd.xlane.f32.xlu0 %v1837
    %v1839 = vpop.xlane.xlu0 %1838
    %v1840 = vsel %vm243, %v1836, 0.0
    %1841 = vadd.xlane.f32.xlu0 %v1840
    %v1842 = vpop.xlane.xlu0 %1841
    %v1843 = vrcp.pop %v1839
    %v1844 = vrcp.pop %v1842
    %v1845 = vmul.f32 %v1834, %v1843
    %v1846 = vmul.f32 %v1836, %v1844
    %1847 = vrot.lane.b32.xlu0 %v1318, 48
    %v1848 = vpop.permute.xlu0 %1847
    %1849 = vrot.lane.b32.xlu0 %v1321, 48
    %v1850 = vpop.permute.xlu0 %1849
    %v1854 = vsel %vm243, %v1845, 0
    %v1857 = vsel %vm243, %v1846, 0
    %1859 = vmatprep.subr.mxu0 0.0
    %1860 = vmatpush1.msra.mxu0 %v1848
    %1861 = vmatprep.subr.mxu0 0.0
    %1862 = vmatpush1.msra.mxu0 %v1850
    %1863 = vmatprep.subr.mxu0 0.0
    %1864 = vmatpush1.msra.mxu0 0.0
    %1865 = vmatprep.subr.mxu0 0.0
    %1866 = vmatpush1.msra.mxu0 0.0
    %1867 = vmatprep.subr.mxu0 0.0
    %1868 = vmatpush1.msra.mxu0 0.0
    %1869 = vmatprep.subr.mxu0 0.0
    %1870 = vmatpush1.msra.mxu0 0.0
    %1871 = vmatprep.subr.mxu0 0.0
    %1872 = vmatpush1.msra.mxu0 0.0
    %1873 = vmatprep.subr.mxu0 0.0
    %1874 = vmatpush1.msra.mxu0 0.0
    %1875 = vmatprep.subr.mxu0 0.0
    %1876 = vmatpush1.msra.mxu0 0.0
    %1877 = vmatprep.subr.mxu0 0.0
    %1878 = vmatpush1.msra.mxu0 0.0
    %1879 = vmatprep.subr.mxu0 0.0
    %1880 = vmatpush1.msra.mxu0 0.0
    %1881 = vmatprep.subr.mxu0 0.0
    %1882 = vmatpush1.msra.mxu0 0.0
    %1883 = vmatprep.subr.mxu0 0.0
    %1884 = vmatpush1.msra.mxu0 0.0
    %1885 = vmatprep.subr.mxu0 0.0
    %1886 = vmatpush1.msra.mxu0 0.0
    %1887 = vmatprep.subr.mxu0 0.0
    %1888 = vmatpush1.msra.mxu0 0.0
    %1889 = vmatprep.subr.mxu0 0.0
    %1890 = vmatpush1.msra.mxu0 0.0
    %1891 = vmatprep.subr.mxu0 0.0
    %1892 = vmatpush1.msra.mxu0 0.0
    %1893 = vmatprep.subr.mxu0 0.0
    %1894 = vmatpush1.msra.mxu0 0.0
    %1895 = vmatprep.subr.mxu0 0.0
    %1896 = vmatpush1.msra.mxu0 0.0
    %1897 = vmatprep.subr.mxu0 0.0
    %1898 = vmatpush1.msra.mxu0 0.0
    %1899 = vmatprep.subr.mxu0 0.0
    %1900 = vmatpush1.msra.mxu0 0.0
    %1901 = vmatprep.subr.mxu0 0.0
    %1902 = vmatpush1.msra.mxu0 0.0
    %1903 = vmatprep.subr.mxu0 0.0
    %1904 = vmatpush1.msra.mxu0 0.0
    %1905 = vmatprep.subr.mxu0 0.0
    %1906 = vmatpush1.msra.mxu0 0.0
    %1907 = vmatprep.subr.mxu0 0.0
    %1908 = vmatpush1.msra.mxu0 0.0
    %1909 = vmatprep.subr.mxu0 0.0
    %1910 = vmatpush1.msra.mxu0 0.0
    %1911 = vmatprep.subr.mxu0 0.0
    %1912 = vmatpush1.msra.mxu0 0.0
    %1913 = vmatprep.subr.mxu0 0.0
    %1914 = vmatpush1.msra.mxu0 0.0
    %1915 = vmatprep.subr.mxu0 0.0
    %1916 = vmatpush1.msra.mxu0 0.0
    %1917 = vmatprep.subr.mxu0 0.0
    %1918 = vmatpush1.msra.mxu0 0.0
    %1919 = vmatprep.subr.mxu0 0.0
    %1920 = vmatpush1.msra.mxu0 0.0
    %1921 = vmatprep.subr.mxu0 0.0
    %1922 = vmatpush1.msra.mxu0 0.0
    %1923 = vmatprep.mubr.f32.mxu0 0.0
    %1924 = vmatmul.mubr.f32.gmra.mrb[0].mxu0 %v1854
    %v1925 = vpop.f32.mrb[0].mxu0
    %v1926 = vadd.f32 0.0, %v1925
    %v1927 = vpop.f32.mrb[0].mxu0
    %1928 = vmatprep.mubr.f32.mxu0 0.0
    %1929 = vmatmul.mubr.f32.gmra.mrb[0].mxu0 %v1857
    %v1930 = vpop.f32.mrb[0].mxu0
    %v1931 = vadd.f32 0.0, %v1930
    %v1932 = vpop.f32.mrb[0].mxu0
    %1933 = vdwg.mxu0
    %1934 = vrot.lane.b32.xlu0 %v1318, 104
    %v1935 = vpop.permute.xlu0 %1934
    %1936 = vrot.lane.b32.xlu0 %v1321, 104
    %v1937 = vpop.permute.xlu0 %1936
    %1938 = vrot.lane.b32.xlu0 %v1318, 72
    %v1939 = vpop.permute.xlu0 %1938
    %1940 = vrot.lane.b32.xlu0 %v1321, 72
    %v1941 = vpop.permute.xlu0 %1940
    %v1942 = vsel %vm155, %v1935, 0
    %v1944 = vsel %vm155, %v1937, 0
    %v1946 = vsel %vm155, %v1939, 0
    %v1948 = vsel %vm155, %v1941, 0
    %1950 = vmatprep.subr.mxu0 0.0
    %1951 = vmatpush1.xpose.msra.mxu0 %v1946
    %1952 = vmatprep.subr.mxu0 0.0
    %1953 = vmatpush1.xpose.msra.mxu0 %v1948
    %1954 = vmatprep.subr.mxu0 0.0
    %1955 = vmatpush1.xpose.msra.mxu0 0.0
    %1956 = vmatprep.subr.mxu0 0.0
    %1957 = vmatpush1.xpose.msra.mxu0 0.0
    %1958 = vmatprep.subr.mxu0 0.0
    %1959 = vmatpush1.xpose.msra.mxu0 0.0
    %1960 = vmatprep.subr.mxu0 0.0
    %1961 = vmatpush1.xpose.msra.mxu0 0.0
    %1962 = vmatprep.subr.mxu0 0.0
    %1963 = vmatpush1.xpose.msra.mxu0 0.0
    %1964 = vmatprep.subr.mxu0 0.0
    %1965 = vmatpush1.xpose.msra.mxu0 0.0
    %1966 = vmatprep.subr.mxu0 0.0
    %1967 = vmatpush1.xpose.msra.mxu0 0.0
    %1968 = vmatprep.subr.mxu0 0.0
    %1969 = vmatpush1.xpose.msra.mxu0 0.0
    %1970 = vmatprep.subr.mxu0 0.0
    %1971 = vmatpush1.xpose.msra.mxu0 0.0
    %1972 = vmatprep.subr.mxu0 0.0
    %1973 = vmatpush1.xpose.msra.mxu0 0.0
    %1974 = vmatprep.subr.mxu0 0.0
    %1975 = vmatpush1.xpose.msra.mxu0 0.0
    %1976 = vmatprep.subr.mxu0 0.0
    %1977 = vmatpush1.xpose.msra.mxu0 0.0
    %1978 = vmatprep.subr.mxu0 0.0
    %1979 = vmatpush1.xpose.msra.mxu0 0.0
    %1980 = vmatprep.subr.mxu0 0.0
    %1981 = vmatpush1.xpose.msra.mxu0 0.0
    %1982 = vmatprep.subr.mxu0 0.0
    %1983 = vmatpush1.xpose.msra.mxu0 0.0
    %1984 = vmatprep.subr.mxu0 0.0
    %1985 = vmatpush1.xpose.msra.mxu0 0.0
    %1986 = vmatprep.subr.mxu0 0.0
    %1987 = vmatpush1.xpose.msra.mxu0 0.0
    %1988 = vmatprep.subr.mxu0 0.0
    %1989 = vmatpush1.xpose.msra.mxu0 0.0
    %1990 = vmatprep.subr.mxu0 0.0
    %1991 = vmatpush1.xpose.msra.mxu0 0.0
    %1992 = vmatprep.subr.mxu0 0.0
    %1993 = vmatpush1.xpose.msra.mxu0 0.0
    %1994 = vmatprep.subr.mxu0 0.0
    %1995 = vmatpush1.xpose.msra.mxu0 0.0
    %1996 = vmatprep.subr.mxu0 0.0
    %1997 = vmatpush1.xpose.msra.mxu0 0.0
    %1998 = vmatprep.subr.mxu0 0.0
    %1999 = vmatpush1.xpose.msra.mxu0 0.0
    %2000 = vmatprep.subr.mxu0 0.0
    %2001 = vmatpush1.xpose.msra.mxu0 0.0
    %2002 = vmatprep.subr.mxu0 0.0
    %2003 = vmatpush1.xpose.msra.mxu0 0.0
    %2004 = vmatprep.subr.mxu0 0.0
    %2005 = vmatpush1.xpose.msra.mxu0 0.0
    %2006 = vmatprep.subr.mxu0 0.0
    %2007 = vmatpush1.xpose.msra.mxu0 0.0
    %2008 = vmatprep.subr.mxu0 0.0
    %2009 = vmatpush1.xpose.msra.mxu0 0.0
    %2010 = vmatprep.subr.mxu0 0.0
    %2011 = vmatpush1.xpose.msra.mxu0 0.0
    %2012 = vmatprep.subr.mxu0 0.0
    %2013 = vmatpush1.xpose.msra.mxu0 0.0
    %2014 = vmatprep.mubr.f32.mxu0 0.0
    %2015 = vmatmul.mubr.f32.gmra.mrb[0].mxu0 %v1942
    %v2016 = vpop.f32.mrb[0].mxu0
    %v2017 = vadd.f32 0.0, %v2016
    %v2018 = vpop.f32.mrb[0].mxu0
    %2019 = vmatprep.mubr.f32.mxu0 0.0
    %2020 = vmatmul.mubr.f32.gmra.mrb[0].mxu0 %v1944
    %v2021 = vpop.f32.mrb[0].mxu0
    %v2022 = vadd.f32 0.0, %v2021
    %v2023 = vpop.f32.mrb[0].mxu0
    %2024 = vdwg.mxu0
    %v2025 = vmul.f32 %v2017, 0.35355338
    %v2026 = vmul.f32 %v2022, 0.35355338
    %v2027 = vadd.f32 %v2025, %v35
    %v2028 = vadd.f32 %v2026, %v36
    %v2029 = vsel %vm243, %v2027, -inf
    %2030 = vmax.xlane.f32.xlu0 %v2029
    %v2031 = vpop.xlane.xlu0 %2030
    %v2032 = vsel %vm243, %v2028, -inf
    %2033 = vmax.xlane.f32.xlu0 %v2032
    %v2034 = vpop.xlane.xlu0 %2033
    %v2035 = vsub.f32 %v2027, %v2031
    %v2036 = vsub.f32 %v2028, %v2034
    %v2037 = vmul.f32 %v2035, 1.442695
    %v2038 = vpow.pop %v2037
    %v2039 = vmul.f32 %v2036, 1.442695
    %v2040 = vpow.pop %v2039
    %v2041 = vsel %vm243, %v2038, 0.0
    %2042 = vadd.xlane.f32.xlu0 %v2041
    %v2043 = vpop.xlane.xlu0 %2042
    %v2044 = vsel %vm243, %v2040, 0.0
    %2045 = vadd.xlane.f32.xlu0 %v2044
    %v2046 = vpop.xlane.xlu0 %2045
    %v2047 = vrcp.pop %v2043
    %v2048 = vrcp.pop %v2046
    %v2049 = vmul.f32 %v2038, %v2047
    %v2050 = vmul.f32 %v2040, %v2048
    %2051 = vrot.lane.b32.xlu0 %v1318, 40
    %v2052 = vpop.permute.xlu0 %2051
    %2053 = vrot.lane.b32.xlu0 %v1321, 40
    %v2054 = vpop.permute.xlu0 %2053
    %v2058 = vsel %vm243, %v2049, 0
    %v2061 = vsel %vm243, %v2050, 0
    %2063 = vmatprep.subr.mxu0 0.0
    %2064 = vmatpush1.msra.mxu0 %v2052
    %2065 = vmatprep.subr.mxu0 0.0
    %2066 = vmatpush1.msra.mxu0 %v2054
    %2067 = vmatprep.subr.mxu0 0.0
    %2068 = vmatpush1.msra.mxu0 0.0
    %2069 = vmatprep.subr.mxu0 0.0
    %2070 = vmatpush1.msra.mxu0 0.0
    %2071 = vmatprep.subr.mxu0 0.0
    %2072 = vmatpush1.msra.mxu0 0.0
    %2073 = vmatprep.subr.mxu0 0.0
    %2074 = vmatpush1.msra.mxu0 0.0
    %2075 = vmatprep.subr.mxu0 0.0
    %2076 = vmatpush1.msra.mxu0 0.0
    %2077 = vmatprep.subr.mxu0 0.0
    %2078 = vmatpush1.msra.mxu0 0.0
    %2079 = vmatprep.subr.mxu0 0.0
    %2080 = vmatpush1.msra.mxu0 0.0
    %2081 = vmatprep.subr.mxu0 0.0
    %2082 = vmatpush1.msra.mxu0 0.0
    %2083 = vmatprep.subr.mxu0 0.0
    %2084 = vmatpush1.msra.mxu0 0.0
    %2085 = vmatprep.subr.mxu0 0.0
    %2086 = vmatpush1.msra.mxu0 0.0
    %2087 = vmatprep.subr.mxu0 0.0
    %2088 = vmatpush1.msra.mxu0 0.0
    %2089 = vmatprep.subr.mxu0 0.0
    %2090 = vmatpush1.msra.mxu0 0.0
    %2091 = vmatprep.subr.mxu0 0.0
    %2092 = vmatpush1.msra.mxu0 0.0
    %2093 = vmatprep.subr.mxu0 0.0
    %2094 = vmatpush1.msra.mxu0 0.0
    %2095 = vmatprep.subr.mxu0 0.0
    %2096 = vmatpush1.msra.mxu0 0.0
    %2097 = vmatprep.subr.mxu0 0.0
    %2098 = vmatpush1.msra.mxu0 0.0
    %2099 = vmatprep.subr.mxu0 0.0
    %2100 = vmatpush1.msra.mxu0 0.0
    %2101 = vmatprep.subr.mxu0 0.0
    %2102 = vmatpush1.msra.mxu0 0.0
    %2103 = vmatprep.subr.mxu0 0.0
    %2104 = vmatpush1.msra.mxu0 0.0
    %2105 = vmatprep.subr.mxu0 0.0
    %2106 = vmatpush1.msra.mxu0 0.0
    %2107 = vmatprep.subr.mxu0 0.0
    %2108 = vmatpush1.msra.mxu0 0.0
    %2109 = vmatprep.subr.mxu0 0.0
    %2110 = vmatpush1.msra.mxu0 0.0
    %2111 = vmatprep.subr.mxu0 0.0
    %2112 = vmatpush1.msra.mxu0 0.0
    %2113 = vmatprep.subr.mxu0 0.0
    %2114 = vmatpush1.msra.mxu0 0.0
    %2115 = vmatprep.subr.mxu0 0.0
    %2116 = vmatpush1.msra.mxu0 0.0
    %2117 = vmatprep.subr.mxu0 0.0
    %2118 = vmatpush1.msra.mxu0 0.0
    %2119 = vmatprep.subr.mxu0 0.0
    %2120 = vmatpush1.msra.mxu0 0.0
    %2121 = vmatprep.subr.mxu0 0.0
    %2122 = vmatpush1.msra.mxu0 0.0
    %2123 = vmatprep.subr.mxu0 0.0
    %2124 = vmatpush1.msra.mxu0 0.0
    %2125 = vmatprep.subr.mxu0 0.0
    %2126 = vmatpush1.msra.mxu0 0.0
    %2127 = vmatprep.mubr.f32.mxu0 0.0
    %2128 = vmatmul.mubr.f32.gmra.mrb[0].mxu0 %v2058
    %v2129 = vpop.f32.mrb[0].mxu0
    %v2130 = vadd.f32 0.0, %v2129
    %v2131 = vpop.f32.mrb[0].mxu0
    %2132 = vmatprep.mubr.f32.mxu0 0.0
    %2133 = vmatmul.mubr.f32.gmra.mrb[0].mxu0 %v2061
    %v2134 = vpop.f32.mrb[0].mxu0
    %v2135 = vadd.f32 0.0, %v2134
    %v2136 = vpop.f32.mrb[0].mxu0
    %2137 = vdwg.mxu0
    %2140 = vrot.lane.b32.xlu0 %v1722, 8
    %v2141 = vpop.permute.xlu0 %2140
    %2142 = vrot.lane.b32.xlu0 %v1727, 8
    %v2143 = vpop.permute.xlu0 %2142
    %2148 = vrot.lane.b32.xlu0 %v1926, 16
    %v2149 = vpop.permute.xlu0 %2148
    %2150 = vrot.lane.b32.xlu0 %v1931, 16
    %v2151 = vpop.permute.xlu0 %2150
    %2156 = vrot.lane.b32.xlu0 %v2130, 24
    %v2157 = vpop.permute.xlu0 %2156
    %2158 = vrot.lane.b32.xlu0 %v2135, 24
    %v2159 = vpop.permute.xlu0 %2158
    %v2162 = vsel %vm155, %v1518, %v2141
    %v2163 = vsel %vm155, %v1523, %v2143
    %v2164 = vsel %vm243, %v2162, %v2149
    %v2165 = vsel %vm243, %v2163, %v2151
    %v2166 = vsel %vm993, %v2164, %v2157
    %v2167 = vsel %vm993, %v2165, %v2159
    %v2168 = vpack.c.bf16 %v2167, %v2166
    %2169 = vrot.lane.b32.xlu0 %v1276, 32
    %v2170 = vpop.permute.xlu0 %2169
    %2171 = vrot.lane.b32.xlu0 %v1277, 32
    %v2172 = vpop.permute.xlu0 %2171
    %2176 = vrot.lane.b32.xlu0 %v1267, 32
    %v2177 = vpop.permute.xlu0 %2176
    %v2180 = vsel %vm48, %v2168, 0
    %2182 = vmatprep.subr.bf16.mxu0 0
    %2183 = vmatpush1.bf16.msra.mxu0 %v2170
    %2184 = vmatprep.subr.bf16.mxu0 0
    %2185 = vmatpush1.bf16.msra.mxu0 %v2172
    %2186 = vmatprep.subr.bf16.mxu0 0
    %2187 = vmatpush1.bf16.msra.mxu0 0
    %2188 = vmatprep.subr.bf16.mxu0 0
    %2189 = vmatpush1.bf16.msra.mxu0 0
    %2190 = vmatprep.subr.bf16.mxu0 0
    %2191 = vmatpush1.bf16.msra.mxu0 0
    %2192 = vmatprep.subr.bf16.mxu0 0
    %2193 = vmatpush1.bf16.msra.mxu0 0
    %2194 = vmatprep.subr.bf16.mxu0 0
    %2195 = vmatpush1.bf16.msra.mxu0 0
    %2196 = vmatprep.subr.bf16.mxu0 0
    %2197 = vmatpush1.bf16.msra.mxu0 0
    %2198 = vmatprep.subr.bf16.mxu0 0
    %2199 = vmatpush1.bf16.msra.mxu0 0
    %2200 = vmatprep.subr.bf16.mxu0 0
    %2201 = vmatpush1.bf16.msra.mxu0 0
    %2202 = vmatprep.subr.bf16.mxu0 0
    %2203 = vmatpush1.bf16.msra.mxu0 0
    %2204 = vmatprep.subr.bf16.mxu0 0
    %2205 = vmatpush1.bf16.msra.mxu0 0
    %2206 = vmatprep.subr.bf16.mxu0 0
    %2207 = vmatpush1.bf16.msra.mxu0 0
    %2208 = vmatprep.subr.bf16.mxu0 0
    %2209 = vmatpush1.bf16.msra.mxu0 0
    %2210 = vmatprep.subr.bf16.mxu0 0
    %2211 = vmatpush1.bf16.msra.mxu0 0
    %2212 = vmatprep.subr.bf16.mxu0 0
    %2213 = vmatpush1.bf16.msra.mxu0 0
    %2214 = vmatprep.mubr.bf16.mxu0 0
    %2215 = vmatmul.mubr.bf16.gmra.mrb[0].mxu0 %v2180
    %v2216 = vpop.f32.mrb[0].mxu0
    %v2217 = vadd.f32 %v2177, %v2216
    %v2218 = vpop.f32.mrb[0].mxu0
    %v2219 = vpop.f32.mrb[0].mxu0
    %v2220 = vadd.f32 %v2177, %v2219
    %v2221 = vpop.f32.mrb[0].mxu0
    %2222 = vdwg.mxu0
    %v2223 = vadd.f32 %v1212, %v2217
    %v2224 = vadd.f32 %v1213, %v2220
    %v2225 = vsel %vm48, %v2223, 0.0
    %2226 = vadd.xlane.f32.xlu0 %v2225
    %v2227 = vpop.xlane.xlu0 %2226
    %v2228 = vsel %vm48, %v2224, 0.0
    %2229 = vadd.xlane.f32.xlu0 %v2228
    %v2230 = vpop.xlane.xlu0 %2229
    %v2231 = vmul.f32 %v2227, %v55
    %v2232 = vmul.f32 %v2230, %v55
    %v2233 = vsub.f32 %v2223, %v2231
    %v2234 = vsub.f32 %v2224, %v2232
    %v2235 = vmul.f32 %v2233, %v2233
    %v2236 = vmul.f32 %v2234, %v2234
    %v2237 = vsel %vm48, %v2235, 0.0
    %2238 = vadd.xlane.f32.xlu0 %v2237
    %v2239 = vpop.xlane.xlu0 %2238
    %v2240 = vsel %vm48, %v2236, 0.0
    %2241 = vadd.xlane.f32.xlu0 %v2240
    %v2242 = vpop.xlane.xlu0 %2241
    %v2243 = vmul.f32 %v2239, %v55
    %v2244 = vmul.f32 %v2242, %v55
    %v2245 = vadd.f32 %v2243, 1e-06
    %v2246 = vadd.f32 %v2244, 1e-06
    %v2247 = vrsqrt.pop %v2245
    %v2248 = vrsqrt.pop %v2246
    %v2249 = vmul.f32 %v2233, %v2247
    %v2250 = vmul.f32 %v2234, %v2248
    %2251 = vrot.lane.b32.xlu0 %v1254, 64
    %v2252 = vpop.permute.xlu0 %2251
    %v2254 = vmul.f32 %v2249, %v2252
    %v2255 = vmul.f32 %v2250, %v2252
    %2256 = vrot.lane.b32.xlu0 %v1254, 32
    %v2257 = vpop.permute.xlu0 %2256
    %v2259 = vadd.f32 %v2254, %v2257
    %v2260 = vadd.f32 %v2255, %v2257
    %v2261 = vpack.c.bf16 %v2260, %v2259
    %v2262 = vlaneseq
    %v2263 = vshrl.u32 %v2262, 7
    %v2264 = vsub.s32 0, %v2263
    %v2265 = vrot.slane %v1216, %v2264
    %v2270 = vunpack.c.l.b16 %v1221
    %v2271 = vunpack.c.l.b16 %v1222
    %v2272 = vunpack.c.l.b16 %v1223
    %v2273 = vunpack.c.l.b16 %v1224
    %v2274 = vpack.c.b16 %v2271, %v2270
    %v2275 = vpack.c.b16 %v2273, %v2272
    %v2279 = vsel %vm48, %v2261, 0
    %2281 = vmatprep.subr.bf16.mxu0 0
    %2282 = vmatpush1.bf16.msra.mxu0 %v2274
    %2283 = vmatprep.subr.bf16.mxu0 0
    %2284 = vmatpush1.bf16.msra.mxu0 %v2275
    %2285 = vmatprep.subr.bf16.mxu0 0
    %2286 = vmatpush1.bf16.msra.mxu0 0
    %2287 = vmatprep.subr.bf16.mxu0 0
    %2288 = vmatpush1.bf16.msra.mxu0 0
    %2289 = vmatprep.subr.bf16.mxu0 0
    %2290 = vmatpush1.bf16.msra.mxu0 0
    %2291 = vmatprep.subr.bf16.mxu0 0
    %2292 = vmatpush1.bf16.msra.mxu0 0
    %2293 = vmatprep.subr.bf16.mxu0 0
    %2294 = vmatpush1.bf16.msra.mxu0 0
    %2295 = vmatprep.subr.bf16.mxu0 0
    %2296 = vmatpush1.bf16.msra.mxu0 0
    %2297 = vmatprep.subr.bf16.mxu0 0
    %2298 = vmatpush1.bf16.msra.mxu0 0
    %2299 = vmatprep.subr.bf16.mxu0 0
    %2300 = vmatpush1.bf16.msra.mxu0 0
    %2301 = vmatprep.subr.bf16.mxu0 0
    %2302 = vmatpush1.bf16.msra.mxu0 0
    %2303 = vmatprep.subr.bf16.mxu0 0
    %2304 = vmatpush1.bf16.msra.mxu0 0
    %2305 = vmatprep.subr.bf16.mxu0 0
    %2306 = vmatpush1.bf16.msra.mxu0 0
    %2307 = vmatprep.subr.bf16.mxu0 0
    %2308 = vmatpush1.bf16.msra.mxu0 0
    %2309 = vmatprep.subr.bf16.mxu0 0
    %2310 = vmatpush1.bf16.msra.mxu0 0
    %2311 = vmatprep.subr.bf16.mxu0 0
    %2312 = vmatpush1.bf16.msra.mxu0 0
    %2313 = vmatprep.mubr.bf16.mxu0 0
    %2314 = vmatmul.mubr.bf16.gmra.mrb[0].mxu0 %v2279
    %v2315 = vpop.f32.mrb[0].mxu0
    %v2316 = vadd.f32 %v2265, %v2315
    %v2317 = vpop.f32.mrb[0].mxu0
    %v2318 = vpop.f32.mrb[0].mxu0
    %v2319 = vadd.f32 %v2265, %v2318
    %v2320 = vpop.f32.mrb[0].mxu0
    %2321 = vdwg.mxu0
    %v2322 = vmax.f32 %v2316, 0.0
    %v2323 = vmax.f32 %v2319, 0.0
    %v2324 = vpack.c.bf16 %v2323, %v2322
    %2325 = vrot.lane.b32.xlu0 %v2274, 64
    %v2326 = vpop.permute.xlu0 %2325
    %2327 = vrot.lane.b32.xlu0 %v2275, 64
    %v2328 = vpop.permute.xlu0 %2327
    %2330 = vrot.lane.b32.xlu0 %v2265, 64
    %v2331 = vpop.permute.xlu0 %2330
    %v2334 = vsel %vm1161, %v2324, 0
    %v2337 = vsel %vm1161, %v2326, 0
    %v2340 = vsel %vm1161, %v2328, 0
    %2342 = vmatprep.subr.bf16.mxu0 0
    %2343 = vmatpush1.bf16.xpose.msra.mxu0 %v2337
    %2344 = vmatprep.subr.bf16.mxu0 0
    %2345 = vmatpush1.bf16.xpose.msra.mxu0 %v2340
    %2346 = vmatprep.subr.bf16.mxu0 0
    %2347 = vmatpush1.bf16.xpose.msra.mxu0 0
    %2348 = vmatprep.subr.bf16.mxu0 0
    %2349 = vmatpush1.bf16.xpose.msra.mxu0 0
    %2350 = vmatprep.subr.bf16.mxu0 0
    %2351 = vmatpush1.bf16.xpose.msra.mxu0 0
    %2352 = vmatprep.subr.bf16.mxu0 0
    %2353 = vmatpush1.bf16.xpose.msra.mxu0 0
    %2354 = vmatprep.subr.bf16.mxu0 0
    %2355 = vmatpush1.bf16.xpose.msra.mxu0 0
    %2356 = vmatprep.subr.bf16.mxu0 0
    %2357 = vmatpush1.bf16.xpose.msra.mxu0 0
    %2358 = vmatprep.subr.bf16.mxu0 0
    %2359 = vmatpush1.bf16.xpose.msra.mxu0 0
    %2360 = vmatprep.subr.bf16.mxu0 0
    %2361 = vmatpush1.bf16.xpose.msra.mxu0 0
    %2362 = vmatprep.subr.bf16.mxu0 0
    %2363 = vmatpush1.bf16.xpose.msra.mxu0 0
    %2364 = vmatprep.subr.bf16.mxu0 0
    %2365 = vmatpush1.bf16.xpose.msra.mxu0 0
    %2366 = vmatprep.subr.bf16.mxu0 0
    %2367 = vmatpush1.bf16.xpose.msra.mxu0 0
    %2368 = vmatprep.subr.bf16.mxu0 0
    %2369 = vmatpush1.bf16.xpose.msra.mxu0 0
    %2370 = vmatprep.subr.bf16.mxu0 0
    %2371 = vmatpush1.bf16.xpose.msra.mxu0 0
    %2372 = vmatprep.subr.bf16.mxu0 0
    %2373 = vmatpush1.bf16.xpose.msra.mxu0 0
    %2374 = vmatprep.mubr.bf16.mxu0 0
    %2375 = vmatmul.mubr.bf16.gmra.mrb[0].mxu0 %v2334
    %v2376 = vpop.f32.mrb[0].mxu0
    %v2377 = vadd.f32 %v2331, %v2376
    %v2378 = vpop.f32.mrb[0].mxu0
    %v2379 = vpop.f32.mrb[0].mxu0
    %v2380 = vadd.f32 %v2331, %v2379
    %v2381 = vpop.f32.mrb[0].mxu0
    %2382 = vdwg.mxu0
    %v2383 = vadd.f32 %v2223, %v2377
    %v2384 = vadd.f32 %v2224, %v2380
    %v2385 = vld [vmem:[%s3 + $0x6] sm:$0x1]
    %v2386 = vsel %vm48, %v2383, 0.0
    %2387 = vadd.xlane.f32.xlu0 %v2386
    %v2388 = vpop.xlane.xlu0 %2387
    %v2389 = vsel %vm48, %v2384, 0.0
    %2390 = vadd.xlane.f32.xlu0 %v2389
    %v2391 = vpop.xlane.xlu0 %2390
    %v2392 = vmul.f32 %v2388, %v55
    %v2393 = vmul.f32 %v2391, %v55
    %v2394 = vsub.f32 %v2383, %v2392
    %v2395 = vsub.f32 %v2384, %v2393
    %v2396 = vmul.f32 %v2394, %v2394
    %v2397 = vmul.f32 %v2395, %v2395
    %v2398 = vsel %vm48, %v2396, 0.0
    %2399 = vadd.xlane.f32.xlu0 %v2398
    %v2400 = vpop.xlane.xlu0 %2399
    %v2401 = vsel %vm48, %v2397, 0.0
    %2402 = vadd.xlane.f32.xlu0 %v2401
    %v2403 = vpop.xlane.xlu0 %2402
    %v2404 = vmul.f32 %v2400, %v55
    %v2405 = vmul.f32 %v2403, %v55
    %v2406 = vadd.f32 %v2404, 1e-06
    %v2407 = vadd.f32 %v2405, 1e-06
    %v2408 = vrsqrt.pop %v2406
    %v2409 = vrsqrt.pop %v2407
    %v2410 = vmul.f32 %v2394, %v2408
    %v2411 = vmul.f32 %v2395, %v2409
    %v2412 = vlaneseq
    %v2413 = vshrl.u32 %v2412, 7
    %v2414 = vsub.s32 0, %v2413
    %v2415 = vrot.slane %v2385, %v2414
    %v2416 = vmul.f32 %v2410, %v2415
    %v2417 = vmul.f32 %v2411, %v2415
    %2419 = vrot.lane.b32.xlu0 %v2415, 96
    %v2420 = vpop.permute.xlu0 %2419
    %v2422 = vadd.f32 %v2416, %v2420
    %v2423 = vadd.f32 %v2417, %v2420
    %2424 = vst.msk [vmem:[#allocation5] sm:$0xff] %vm48, %v2422
    %2425 = vst.msk [vmem:[#allocation5 + $0x8] sm:$0xff] %vm48, %v2423
    // Predicated region
    $region22: #{_lambda_.1} parent=1 // pred_check
      _
    $region23: #{_lambda_.1} parent=1 // pred_check_branch
      %2427 = sbr.rel (0) target = $region25
    $region24: #{_lambda_.1} parent=1 // pred_region
      %s2429 = ssub.s32 256, 256
      %2430 = vsyncadd [#allocation4], %s2429
      %s2431 = sshll.u32 [#allocation5], 4
      %s2432 = int_to_ptr.vmem [resolvable:$true] %s2431
      %2437 = dma.vmem_to_hbm [thread:$0]  %s2432, 256, %s4, [#allocation4], 128, 128, 8
    $region25: #{_lambda_.1} parent=1 // pred_fallthru
      _
    // Predicated region
    $region26: #{_lambda_.1} parent=1 // pred_check
      _
    $region27: #{_lambda_.1} parent=1 // pred_check_branch
      %2439 = sbr.rel (0) target = $region29
    $region28: #{_lambda_.1} parent=1 // pred_region
      %2440 = dma.done [#allocation4], 256
    $region29: #{_lambda_.1} parent=1 // pred_fallthru
      _
    %2441 = vsyncpa [#allocation3], 1
    %2442 = vsyncpa [#allocation4], 1

</llo_original>
